<compile_context>
chip_gen: v6e
topology: v6e:2x2x1
jax: 0.10.0
libtpu: 0.0.40
codegen_flags: <defaults>
</compile_context>

<pallas_src>
import jax
import jax.numpy as jnp
import numpy as np
from jax.experimental import pallas as pl
from jax.experimental.pallas import tpu as pltpu

# ---- problem sizes (small, consistent with the module) -----------------------
BATCH = 2
SEQ_LEN = 32          # embed_dim of the MultiheadAttention
CHANNELS = 16         # number of attention tokens after the permute
NUM_HEADS = 2         # constructor default is 10, but seq_len % num_heads must be 0
HEAD_DIM = SEQ_LEN // NUM_HEADS
LN_EPS = 1e-5

E = SEQ_LEN
C = CHANNELS


# ---- Pallas kernel: fused MHA + residual + LayerNorm for the whole batch -----
def csa_kernel(x_ref, w_in_ref, w_out_ref, p_ref, o_ref):
    # x_ref:     (B, E, C)   native (batch, seq_len, channels) input
    # w_in_ref:  (3E, E)     [Wq*scale ; Wk ; Wv]  (PyTorch in_proj layout, scale folded)
    # w_out_ref: (H*E, Dh)   per-head column blocks of Wo, stacked along sublanes
    # p_ref:     (6E, C)     [bq*scale ; bk ; bv ; bo ; gamma ; beta], pre-broadcast over C
    # o_ref:     (B, E, C)   native (batch, seq_len, channels) output
    n_b = x_ref.shape[0]

    w_in = w_in_ref[...]
    w_out = w_out_ref[...]
    p = p_ref[...]

    b_in  = p[0:3 * E, :]          # (3E, C)
    b_o   = p[3 * E:4 * E, :]      # (E, C)
    gamma = p[4 * E:5 * E, :]      # (E, C)
    beta  = p[5 * E:6 * E, :]      # (E, C)

    # 1) In-projection in the transposed orientation: qkv^T = W_in @ x_b^T + b.
    #    x_ref[b,:,:] is already x_b^T (seq_len on sublanes, channels on lanes).
    xT = [x_ref[b, :, :] for b in range(n_b)]                              # (E, C)
    qkvT = [jnp.dot(w_in, xT[b], preferred_element_type=jnp.float32) + b_in
            for b in range(n_b)]                                           # (3E, C)

    # 2) Scores for every (batch, head), stacked along sublanes -> one softmax.
    s_tiles = []
    for b in range(n_b):
        for h in range(NUM_HEADS):
            lo = h * HEAD_DIM
            qh = qkvT[b][lo:lo + HEAD_DIM, :].T                            # (C, Dh)
            kT = qkvT[b][E + lo:E + lo + HEAD_DIM, :]                      # (Dh, C)
            s_tiles.append(jnp.dot(qh, kT, preferred_element_type=jnp.float32))
    s = jnp.concatenate(s_tiles, axis=0)                                   # (B*H*C, C)

    s = s - jnp.max(s, axis=-1, keepdims=True)
    e = jnp.exp(s)
    prob = e / jnp.sum(e, axis=-1, keepdims=True)                          # exact divide

    # 3) Per-head context + per-head out-projection accumulation, residual and
    #    LayerNorm — all in the transposed orientation (seq_len on sublanes).
    for b in range(n_b):
        accT = None
        for h in range(NUM_HEADS):
            idx = b * NUM_HEADS + h
            p_bh = prob[idx * C:(idx + 1) * C, :]                          # (C, C)
            vT = qkvT[b][2 * E + h * HEAD_DIM:2 * E + (h + 1) * HEAD_DIM, :]  # (Dh, C)
            # o_h^T = v_h^T @ P^T  (rhs-transposed contraction, no relayout)
            ohT = jax.lax.dot_general(vT, p_bh, (((1,), (1,)), ((), ())),
                                      preferred_element_type=jnp.float32)  # (Dh, C)
            term = jnp.dot(w_out[h * E:(h + 1) * E, :], ohT,
                           preferred_element_type=jnp.float32)             # (E, C)
            accT = term if accT is None else accT + term

        y = accT + b_o + xT[b]                                             # residual
        # LayerNorm over the embed (seq_len) axis = sublane axis here; f32 stats.
        mu = jnp.mean(y, axis=0, keepdims=True)                            # (1, C)
        var = jnp.mean((y - mu) ** 2, axis=0, keepdims=True)
        yn = (y - mu) * jax.lax.rsqrt(var + LN_EPS)
        o_ref[b, :, :] = yn * gamma + beta                                 # (E, C)


# ---- one-time param packing (hoisted out of the per-call path) ---------------
def pack_params(params):
    """Fold 1/sqrt(head_dim) into Wq/bq and stack operands so every in-kernel
    slice is sublane-aligned. Call once at init, not once per forward call."""
    wq, wk, wv, bq, bk, bv, wo, bo, gamma, beta = params
    scale = 1.0 / float(np.sqrt(HEAD_DIM))

    w_in = jnp.concatenate([wq * scale, wk, wv], axis=0)                   # (3E, E)
    w_out = jnp.concatenate(
        [wo[:, h * HEAD_DIM:(h + 1) * HEAD_DIM] for h in range(NUM_HEADS)],
        axis=0)                                                            # (H*E, Dh)

    def _col(v):   # (1, E) row vector -> (E, C) lane-broadcast block
        return jnp.broadcast_to(v.reshape(E, 1), (E, C))

    p_slab = jnp.concatenate(
        [_col(bq * scale), _col(bk), _col(bv), _col(bo), _col(gamma), _col(beta)],
        axis=0)                                                            # (6E, C)

    return (w_in.astype(jnp.float32), w_out.astype(jnp.float32),
            p_slab.astype(jnp.float32))


# ---- wrapper ------------------------------------------------------------------
def channel_self_attention(x, packed):
    """x: (B, seq_len, channels) -> (B, seq_len, channels). No wrapper-side
    transposes — the kernel consumes and produces the native layout."""
    w_in, w_out, p_slab = packed
    B = x.shape[0]

    flops = B * (2 * 3 * E * E * C) + B * NUM_HEADS * (
        2 * C * C * HEAD_DIM +      # q @ k^T
        2 * C * C * HEAD_DIM +      # P @ v
        2 * E * HEAD_DIM * C)       # per-head out-projection
    bytes_accessed = 4 * (x.size + w_in.size + w_out.size + p_slab.size + B * E * C)

    return pl.pallas_call(
        csa_kernel,
        out_shape=jax.ShapeDtypeStruct((B, E, C), jnp.float32),
        grid_spec=pltpu.PrefetchScalarGridSpec(
            num_scalar_prefetch=0,
            grid=(1,),                                   # whole problem in one step
            in_specs=[
                pl.BlockSpec((B, E, C), lambda i: (0, 0, 0)),              # x (native)
                pl.BlockSpec((3 * E, E), lambda i: (0, 0)),                # W_in
                pl.BlockSpec((NUM_HEADS * E, HEAD_DIM), lambda i: (0, 0)),  # Wo blocks
                pl.BlockSpec((6 * E, C), lambda i: (0, 0)),                # biases/LN
            ],
            out_specs=pl.BlockSpec((B, E, C), lambda i: (0, 0, 0)),
        ),
        compiler_params=pltpu.CompilerParams(dimension_semantics=("arbitrary",)),
        cost_estimate=pl.CostEstimate(
            flops=flops,
            transcendentals=B * NUM_HEADS * C * C + B * C,
            bytes_accessed=bytes_accessed),
    )(x, w_in, w_out, p_slab)


# ---- pure-JAX reference for correctness check --------------------------------
def reference(x, params):
    wq, wk, wv, bq, bk, bv, wo, bo, gamma, beta = params
    xp = jnp.transpose(x, (0, 2, 1))               # (B, C, E)
    B, Cc, Ee = xp.shape
    q = xp @ wq.T + bq
    k = xp @ wk.T + bk
    v = xp @ wv.T + bv
    qh = q.reshape(B, Cc, NUM_HEADS, HEAD_DIM).transpose(0, 2, 1, 3)
    kh = k.reshape(B, Cc, NUM_HEADS, HEAD_DIM).transpose(0, 2, 1, 3)
    vh = v.reshape(B, Cc, NUM_HEADS, HEAD_DIM).transpose(0, 2, 1, 3)
    s = jnp.einsum('bhqd,bhkd->bhqk', qh, kh) / jnp.sqrt(jnp.float32(HEAD_DIM))
    p = jax.nn.softmax(s, axis=-1)
    o = jnp.einsum('bhqk,bhkd->bhqd', p, vh).transpose(0, 2, 1, 3).reshape(B, Cc, Ee)
    o = o @ wo.T + bo
    y = o + xp
    mu = y.mean(-1, keepdims=True)
    var = ((y - mu) ** 2).mean(-1, keepdims=True)
    yn = (y - mu) / jnp.sqrt(var + LN_EPS) * gamma + beta
    return jnp.transpose(yn, (0, 2, 1))


def init_params(key):
    ks = jax.random.split(key, 8)
    scale = 0.1
    wq = scale * jax.random.normal(ks[0], (E, E), jnp.float32)
    wk = scale * jax.random.normal(ks[1], (E, E), jnp.float32)
    wv = scale * jax.random.normal(ks[2], (E, E), jnp.float32)
    bq = scale * jax.random.normal(ks[3], (1, E), jnp.float32)
    bk = scale * jax.random.normal(ks[4], (1, E), jnp.float32)
    bv = scale * jax.random.normal(ks[5], (1, E), jnp.float32)
    wo = scale * jax.random.normal(ks[6], (E, E), jnp.float32)
    bo = scale * jax.random.normal(ks[7], (1, E), jnp.float32)
    gamma = jnp.ones((1, E), jnp.float32)          # LayerNorm default init
    beta = jnp.zeros((1, E), jnp.float32)
    return (wq, wk, wv, bq, bk, bv, wo, bo, gamma, beta)


if __name__ == "__main__":
    key = jax.random.PRNGKey(0)
    k_x, k_p = jax.random.split(key)
    x = jax.random.normal(k_x, (BATCH, SEQ_LEN, CHANNELS), jnp.float32)
    params = init_params(k_p)

    packed = pack_params(params)                   # packed once, reused per call
    fwd = jax.jit(channel_self_attention)

    out = jax.block_until_ready(fwd(x, packed))
    ref = jax.block_until_ready(reference(x, params))

    np.testing.assert_allclose(np.asarray(out), np.asarray(ref), rtol=1e-2, atol=1e-2)
    assert out.shape == x.shape

    print("KERNEL_OK")
</pallas_src>

<mosaic_0001>
module attributes {stable_mosaic.version = 11 : i64} {
  func.func @csa_kernel(%arg0: i32, %arg1: memref<2x32x16xf32, #tpu.memory_space<vmem>>, %arg2: memref<96x32xf32, #tpu.memory_space<vmem>>, %arg3: memref<64x16xf32, #tpu.memory_space<vmem>>, %arg4: memref<192x16xf32, #tpu.memory_space<vmem>>, %arg5: memref<2x32x16xf32, #tpu.memory_space<vmem>>) attributes {dimension_semantics = [#tpu.dimension_semantics<arbitrary>], iteration_bounds = array<i64: 1>, scalar_prefetch = 0 : i64, scratch_operands = 0 : i64, tpu.core_type = #tpu.core_type<tc>, window_params = [{pipeline_mode = #tpu.pipeline_mode<synchronous>, transform_indices = @transform_0, window_bounds = array<i64: 2, 32, 16>}, {pipeline_mode = #tpu.pipeline_mode<synchronous>, transform_indices = @transform_1, window_bounds = array<i64: 96, 32>}, {pipeline_mode = #tpu.pipeline_mode<synchronous>, transform_indices = @transform_2, window_bounds = array<i64: 64, 16>}, {pipeline_mode = #tpu.pipeline_mode<synchronous>, transform_indices = @transform_3, window_bounds = array<i64: 192, 16>}, {pipeline_mode = #tpu.pipeline_mode<synchronous>, transform_indices = @transform_4, window_bounds = array<i64: 2, 32, 16>}]} {
    %c0 = arith.constant 0 : index
    %c0_0 = arith.constant 0 : index
    %0 = vector.load %arg2[%c0, %c0_0] : memref<96x32xf32, #tpu.memory_space<vmem>>, vector<96x32xf32>
    %c0_1 = arith.constant 0 : index
    %c0_2 = arith.constant 0 : index
    %1 = vector.load %arg3[%c0_1, %c0_2] : memref<64x16xf32, #tpu.memory_space<vmem>>, vector<64x16xf32>
    %c0_3 = arith.constant 0 : index
    %c0_4 = arith.constant 0 : index
    %2 = vector.load %arg4[%c0_3, %c0_4] : memref<192x16xf32, #tpu.memory_space<vmem>>, vector<192x16xf32>
    %3 = vector.extract_strided_slice %2 {offsets = [0, 0], sizes = [96, 16], strides = [1, 1]} : vector<192x16xf32> to vector<96x16xf32>
    %4 = vector.extract_strided_slice %2 {offsets = [96, 0], sizes = [32, 16], strides = [1, 1]} : vector<192x16xf32> to vector<32x16xf32>
    %5 = vector.extract_strided_slice %2 {offsets = [128, 0], sizes = [32, 16], strides = [1, 1]} : vector<192x16xf32> to vector<32x16xf32>
    %6 = vector.extract_strided_slice %2 {offsets = [160, 0], sizes = [32, 16], strides = [1, 1]} : vector<192x16xf32> to vector<32x16xf32>
    %c0_5 = arith.constant 0 : index
    %c0_6 = arith.constant 0 : index
    %c0_7 = arith.constant 0 : index
    %7 = vector.load %arg1[%c0_5, %c0_6, %c0_7] : memref<2x32x16xf32, #tpu.memory_space<vmem>>, vector<1x32x16xf32>
    %8 = vector.shape_cast %7 : vector<1x32x16xf32> to vector<32x16xf32>
    %c1 = arith.constant 1 : index
    %c0_8 = arith.constant 0 : index
    %c0_9 = arith.constant 0 : index
    %9 = vector.load %arg1[%c1, %c0_8, %c0_9] : memref<2x32x16xf32, #tpu.memory_space<vmem>>, vector<1x32x16xf32>
    %10 = vector.shape_cast %9 : vector<1x32x16xf32> to vector<32x16xf32>
    %cst = arith.constant dense<0.000000e+00> : vector<96x16xf32>
    %11 = tpu.matmul %0, %8, %cst {dimension_numbers = #tpu.dot_dimension_numbers<[1], [0], [0], [1], [0, 0, 1, 1], [], []>} : vector<96x32xf32>, vector<32x16xf32>, vector<96x16xf32> -> vector<96x16xf32>
    %12 = arith.addf %11, %3 : vector<96x16xf32>
    %cst_10 = arith.constant dense<0.000000e+00> : vector<96x16xf32>
    %13 = tpu.matmul %0, %10, %cst_10 {dimension_numbers = #tpu.dot_dimension_numbers<[1], [0], [0], [1], [0, 0, 1, 1], [], []>} : vector<96x32xf32>, vector<32x16xf32>, vector<96x16xf32> -> vector<96x16xf32>
    %14 = arith.addf %13, %3 : vector<96x16xf32>
    %15 = vector.extract_strided_slice %12 {offsets = [0, 0], sizes = [16, 16], strides = [1, 1]} : vector<96x16xf32> to vector<16x16xf32>
    %16 = tpu.transpose %15, [1, 0] : vector<16x16xf32> -> vector<16x16xf32>
    %17 = vector.extract_strided_slice %12 {offsets = [32, 0], sizes = [16, 16], strides = [1, 1]} : vector<96x16xf32> to vector<16x16xf32>
    %cst_11 = arith.constant dense<0.000000e+00> : vector<16x16xf32>
    %18 = tpu.matmul %16, %17, %cst_11 {dimension_numbers = #tpu.dot_dimension_numbers<[1], [0], [0], [1], [0, 0, 1, 1], [], []>} : vector<16x16xf32>, vector<16x16xf32>, vector<16x16xf32> -> vector<16x16xf32>
    %19 = vector.extract_strided_slice %12 {offsets = [16, 0], sizes = [16, 16], strides = [1, 1]} : vector<96x16xf32> to vector<16x16xf32>
    %20 = tpu.transpose %19, [1, 0] : vector<16x16xf32> -> vector<16x16xf32>
    %21 = vector.extract_strided_slice %12 {offsets = [48, 0], sizes = [16, 16], strides = [1, 1]} : vector<96x16xf32> to vector<16x16xf32>
    %cst_12 = arith.constant dense<0.000000e+00> : vector<16x16xf32>
    %22 = tpu.matmul %20, %21, %cst_12 {dimension_numbers = #tpu.dot_dimension_numbers<[1], [0], [0], [1], [0, 0, 1, 1], [], []>} : vector<16x16xf32>, vector<16x16xf32>, vector<16x16xf32> -> vector<16x16xf32>
    %23 = vector.extract_strided_slice %14 {offsets = [0, 0], sizes = [16, 16], strides = [1, 1]} : vector<96x16xf32> to vector<16x16xf32>
    %24 = tpu.transpose %23, [1, 0] : vector<16x16xf32> -> vector<16x16xf32>
    %25 = vector.extract_strided_slice %14 {offsets = [32, 0], sizes = [16, 16], strides = [1, 1]} : vector<96x16xf32> to vector<16x16xf32>
    %cst_13 = arith.constant dense<0.000000e+00> : vector<16x16xf32>
    %26 = tpu.matmul %24, %25, %cst_13 {dimension_numbers = #tpu.dot_dimension_numbers<[1], [0], [0], [1], [0, 0, 1, 1], [], []>} : vector<16x16xf32>, vector<16x16xf32>, vector<16x16xf32> -> vector<16x16xf32>
    %27 = vector.extract_strided_slice %14 {offsets = [16, 0], sizes = [16, 16], strides = [1, 1]} : vector<96x16xf32> to vector<16x16xf32>
    %28 = tpu.transpose %27, [1, 0] : vector<16x16xf32> -> vector<16x16xf32>
    %29 = vector.extract_strided_slice %14 {offsets = [48, 0], sizes = [16, 16], strides = [1, 1]} : vector<96x16xf32> to vector<16x16xf32>
    %cst_14 = arith.constant dense<0.000000e+00> : vector<16x16xf32>
    %30 = tpu.matmul %28, %29, %cst_14 {dimension_numbers = #tpu.dot_dimension_numbers<[1], [0], [0], [1], [0, 0, 1, 1], [], []>} : vector<16x16xf32>, vector<16x16xf32>, vector<16x16xf32> -> vector<16x16xf32>
    %31 = tpu.concatenate %18, %22, %26, %30 in 0 : vector<16x16xf32>, vector<16x16xf32>, vector<16x16xf32>, vector<16x16xf32> -> vector<64x16xf32>
    %cst_15 = arith.constant dense<0xFF800000> : vector<64xf32>
    %32 = vector.multi_reduction <maximumf>, %31, %cst_15 [1] : vector<64x16xf32> to vector<64xf32>
    %33 = vector.shape_cast %32 : vector<64xf32> to vector<64x1xf32>
    %34 = vector.broadcast %33 : vector<64x1xf32> to vector<64x16xf32>
    %35 = arith.subf %31, %34 : vector<64x16xf32>
    %36 = math.exp %35 : vector<64x16xf32>
    %cst_16 = arith.constant dense<0.000000e+00> : vector<64xf32>
    %37 = vector.multi_reduction <add>, %36, %cst_16 [1] : vector<64x16xf32> to vector<64xf32>
    %38 = vector.shape_cast %37 : vector<64xf32> to vector<64x1xf32>
    %39 = vector.broadcast %38 : vector<64x1xf32> to vector<64x16xf32>
    %40 = arith.divf %36, %39 : vector<64x16xf32>
    %41 = vector.extract_strided_slice %40 {offsets = [0, 0], sizes = [16, 16], strides = [1, 1]} : vector<64x16xf32> to vector<16x16xf32>
    %42 = vector.extract_strided_slice %12 {offsets = [64, 0], sizes = [16, 16], strides = [1, 1]} : vector<96x16xf32> to vector<16x16xf32>
    %cst_17 = arith.constant dense<0.000000e+00> : vector<16x16xf32>
    %43 = tpu.matmul %42, %41, %cst_17 {dimension_numbers = #tpu.dot_dimension_numbers<[1], [1], [0], [0], [0, 0, 1, 0], [], []>} : vector<16x16xf32>, vector<16x16xf32>, vector<16x16xf32> -> vector<16x16xf32>
    %44 = vector.extract_strided_slice %1 {offsets = [0, 0], sizes = [32, 16], strides = [1, 1]} : vector<64x16xf32> to vector<32x16xf32>
    %cst_18 = arith.constant dense<0.000000e+00> : vector<32x16xf32>
    %45 = tpu.matmul %44, %43, %cst_18 {dimension_numbers = #tpu.dot_dimension_numbers<[1], [0], [0], [1], [0, 0, 1, 1], [], []>} : vector<32x16xf32>, vector<16x16xf32>, vector<32x16xf32> -> vector<32x16xf32>
    %46 = vector.extract_strided_slice %40 {offsets = [16, 0], sizes = [16, 16], strides = [1, 1]} : vector<64x16xf32> to vector<16x16xf32>
    %47 = vector.extract_strided_slice %12 {offsets = [80, 0], sizes = [16, 16], strides = [1, 1]} : vector<96x16xf32> to vector<16x16xf32>
    %cst_19 = arith.constant dense<0.000000e+00> : vector<16x16xf32>
    %48 = tpu.matmul %47, %46, %cst_19 {dimension_numbers = #tpu.dot_dimension_numbers<[1], [1], [0], [0], [0, 0, 1, 0], [], []>} : vector<16x16xf32>, vector<16x16xf32>, vector<16x16xf32> -> vector<16x16xf32>
    %49 = vector.extract_strided_slice %1 {offsets = [32, 0], sizes = [32, 16], strides = [1, 1]} : vector<64x16xf32> to vector<32x16xf32>
    %cst_20 = arith.constant dense<0.000000e+00> : vector<32x16xf32>
    %50 = tpu.matmul %49, %48, %cst_20 {dimension_numbers = #tpu.dot_dimension_numbers<[1], [0], [0], [1], [0, 0, 1, 1], [], []>} : vector<32x16xf32>, vector<16x16xf32>, vector<32x16xf32> -> vector<32x16xf32>
    %51 = arith.addf %45, %50 : vector<32x16xf32>
    %52 = arith.addf %51, %4 : vector<32x16xf32>
    %53 = arith.addf %52, %8 : vector<32x16xf32>
    %cst_21 = arith.constant dense<0.000000e+00> : vector<16xf32>
    %54 = vector.multi_reduction <add>, %53, %cst_21 [0] : vector<32x16xf32> to vector<16xf32>
    %55 = vector.shape_cast %54 : vector<16xf32> to vector<1x16xf32>
    %cst_22 = arith.constant 3.200000e+01 : f32
    %56 = vector.broadcast %cst_22 : f32 to vector<1x16xf32>
    %57 = arith.divf %55, %56 : vector<1x16xf32>
    %58 = vector.broadcast %57 : vector<1x16xf32> to vector<32x16xf32>
    %59 = arith.subf %53, %58 : vector<32x16xf32>
    %60 = arith.mulf %59, %59 : vector<32x16xf32>
    %cst_23 = arith.constant dense<0.000000e+00> : vector<16xf32>
    %61 = vector.multi_reduction <add>, %60, %cst_23 [0] : vector<32x16xf32> to vector<16xf32>
    %62 = vector.shape_cast %61 : vector<16xf32> to vector<1x16xf32>
    %cst_24 = arith.constant 3.200000e+01 : f32
    %63 = vector.broadcast %cst_24 : f32 to vector<1x16xf32>
    %64 = arith.divf %62, %63 : vector<1x16xf32>
    %65 = vector.broadcast %57 : vector<1x16xf32> to vector<32x16xf32>
    %66 = arith.subf %53, %65 : vector<32x16xf32>
    %cst_25 = arith.constant 9.99999974E-6 : f32
    %67 = vector.broadcast %cst_25 : f32 to vector<1x16xf32>
    %68 = arith.addf %64, %67 : vector<1x16xf32>
    %69 = math.rsqrt %68 : vector<1x16xf32>
    %70 = vector.broadcast %69 : vector<1x16xf32> to vector<32x16xf32>
    %71 = arith.mulf %66, %70 : vector<32x16xf32>
    %72 = arith.mulf %71, %5 : vector<32x16xf32>
    %73 = arith.addf %72, %6 : vector<32x16xf32>
    %c0_26 = arith.constant 0 : index
    %c0_27 = arith.constant 0 : index
    %c0_28 = arith.constant 0 : index
    %74 = vector.load %arg5[%c0_26, %c0_27, %c0_28] : memref<2x32x16xf32, #tpu.memory_space<vmem>>, vector<1x32x16xf32>
    %75 = vector.shape_cast %74 : vector<1x32x16xf32> to vector<32x16xf32>
    %76 = vector.shape_cast %73 : vector<32x16xf32> to vector<1x32x16xf32>
    tpu.vector_store %arg5[%c0_26, %c0_27, %c0_28], %76 {strides = array<i32>} : memref<2x32x16xf32, #tpu.memory_space<vmem>>, vector<1x32x16xf32>,
    %77 = vector.extract_strided_slice %40 {offsets = [32, 0], sizes = [16, 16], strides = [1, 1]} : vector<64x16xf32> to vector<16x16xf32>
    %78 = vector.extract_strided_slice %14 {offsets = [64, 0], sizes = [16, 16], strides = [1, 1]} : vector<96x16xf32> to vector<16x16xf32>
    %cst_29 = arith.constant dense<0.000000e+00> : vector<16x16xf32>
    %79 = tpu.matmul %78, %77, %cst_29 {dimension_numbers = #tpu.dot_dimension_numbers<[1], [1], [0], [0], [0, 0, 1, 0], [], []>} : vector<16x16xf32>, vector<16x16xf32>, vector<16x16xf32> -> vector<16x16xf32>
    %80 = vector.extract_strided_slice %1 {offsets = [0, 0], sizes = [32, 16], strides = [1, 1]} : vector<64x16xf32> to vector<32x16xf32>
    %cst_30 = arith.constant dense<0.000000e+00> : vector<32x16xf32>
    %81 = tpu.matmul %80, %79, %cst_30 {dimension_numbers = #tpu.dot_dimension_numbers<[1], [0], [0], [1], [0, 0, 1, 1], [], []>} : vector<32x16xf32>, vector<16x16xf32>, vector<32x16xf32> -> vector<32x16xf32>
    %82 = vector.extract_strided_slice %40 {offsets = [48, 0], sizes = [16, 16], strides = [1, 1]} : vector<64x16xf32> to vector<16x16xf32>
    %83 = vector.extract_strided_slice %14 {offsets = [80, 0], sizes = [16, 16], strides = [1, 1]} : vector<96x16xf32> to vector<16x16xf32>
    %cst_31 = arith.constant dense<0.000000e+00> : vector<16x16xf32>
    %84 = tpu.matmul %83, %82, %cst_31 {dimension_numbers = #tpu.dot_dimension_numbers<[1], [1], [0], [0], [0, 0, 1, 0], [], []>} : vector<16x16xf32>, vector<16x16xf32>, vector<16x16xf32> -> vector<16x16xf32>
    %85 = vector.extract_strided_slice %1 {offsets = [32, 0], sizes = [32, 16], strides = [1, 1]} : vector<64x16xf32> to vector<32x16xf32>
    %cst_32 = arith.constant dense<0.000000e+00> : vector<32x16xf32>
    %86 = tpu.matmul %85, %84, %cst_32 {dimension_numbers = #tpu.dot_dimension_numbers<[1], [0], [0], [1], [0, 0, 1, 1], [], []>} : vector<32x16xf32>, vector<16x16xf32>, vector<32x16xf32> -> vector<32x16xf32>
    %87 = arith.addf %81, %86 : vector<32x16xf32>
    %88 = arith.addf %87, %4 : vector<32x16xf32>
    %89 = arith.addf %88, %10 : vector<32x16xf32>
    %cst_33 = arith.constant dense<0.000000e+00> : vector<16xf32>
    %90 = vector.multi_reduction <add>, %89, %cst_33 [0] : vector<32x16xf32> to vector<16xf32>
    %91 = vector.shape_cast %90 : vector<16xf32> to vector<1x16xf32>
    %cst_34 = arith.constant 3.200000e+01 : f32
    %92 = vector.broadcast %cst_34 : f32 to vector<1x16xf32>
    %93 = arith.divf %91, %92 : vector<1x16xf32>
    %94 = vector.broadcast %93 : vector<1x16xf32> to vector<32x16xf32>
    %95 = arith.subf %89, %94 : vector<32x16xf32>
    %96 = arith.mulf %95, %95 : vector<32x16xf32>
    %cst_35 = arith.constant dense<0.000000e+00> : vector<16xf32>
    %97 = vector.multi_reduction <add>, %96, %cst_35 [0] : vector<32x16xf32> to vector<16xf32>
    %98 = vector.shape_cast %97 : vector<16xf32> to vector<1x16xf32>
    %cst_36 = arith.constant 3.200000e+01 : f32
    %99 = vector.broadcast %cst_36 : f32 to vector<1x16xf32>
    %100 = arith.divf %98, %99 : vector<1x16xf32>
    %101 = vector.broadcast %93 : vector<1x16xf32> to vector<32x16xf32>
    %102 = arith.subf %89, %101 : vector<32x16xf32>
    %cst_37 = arith.constant 9.99999974E-6 : f32
    %103 = vector.broadcast %cst_37 : f32 to vector<1x16xf32>
    %104 = arith.addf %100, %103 : vector<1x16xf32>
    %105 = math.rsqrt %104 : vector<1x16xf32>
    %106 = vector.broadcast %105 : vector<1x16xf32> to vector<32x16xf32>
    %107 = arith.mulf %102, %106 : vector<32x16xf32>
    %108 = arith.mulf %107, %5 : vector<32x16xf32>
    %109 = arith.addf %108, %6 : vector<32x16xf32>
    %c1_38 = arith.constant 1 : index
    %c0_39 = arith.constant 0 : index
    %c0_40 = arith.constant 0 : index
    %110 = vector.load %arg5[%c1_38, %c0_39, %c0_40] : memref<2x32x16xf32, #tpu.memory_space<vmem>>, vector<1x32x16xf32>
    %111 = vector.shape_cast %110 : vector<1x32x16xf32> to vector<32x16xf32>
    %112 = vector.shape_cast %109 : vector<32x16xf32> to vector<1x32x16xf32>
    tpu.vector_store %arg5[%c1_38, %c0_39, %c0_40], %112 {strides = array<i32>} : memref<2x32x16xf32, #tpu.memory_space<vmem>>, vector<1x32x16xf32>,
    return
  }
  func.func @transform_0(%arg0: i32) -> (i32, i32, i32) {
    %c0_i32 = arith.constant 0 : i32
    %c0_i32_0 = arith.constant 0 : i32
    %c0_i32_1 = arith.constant 0 : i32
    %c0_i32_2 = arith.constant 0 : i32
    return %c0_i32, %c0_i32_0, %c0_i32_1 : i32, i32, i32
  }
  func.func @transform_1(%arg0: i32) -> (i32, i32) {
    %c0_i32 = arith.constant 0 : i32
    %c0_i32_0 = arith.constant 0 : i32
    %c0_i32_1 = arith.constant 0 : i32
    return %c0_i32, %c0_i32_0 : i32, i32
  }
  func.func @transform_2(%arg0: i32) -> (i32, i32) {
    %c0_i32 = arith.constant 0 : i32
    %c0_i32_0 = arith.constant 0 : i32
    %c0_i32_1 = arith.constant 0 : i32
    return %c0_i32, %c0_i32_0 : i32, i32
  }
  func.func @transform_3(%arg0: i32) -> (i32, i32) {
    %c0_i32 = arith.constant 0 : i32
    %c0_i32_0 = arith.constant 0 : i32
    %c0_i32_1 = arith.constant 0 : i32
    return %c0_i32, %c0_i32_0 : i32, i32
  }
  func.func @transform_4(%arg0: i32) -> (i32, i32, i32) {
    %c0_i32 = arith.constant 0 : i32
    %c0_i32_0 = arith.constant 0 : i32
    %c0_i32_1 = arith.constant 0 : i32
    %c0_i32_2 = arith.constant 0 : i32
    return %c0_i32, %c0_i32_0, %c0_i32_1 : i32, i32, i32
  }
}

</mosaic_0001>

<llo_original>
// kernel: channel_self_attention.1
$region0: #{channel_self_attention.1}
  #allocation0 [shape = 'u32[]', space=smem, size = 0x4, offset = 0x4, fixed_abs, tag = 'smem constant byte address 0x4 - core index']
  #allocation1 [shape = 'u32[144,128]{1,0:T(1,128)}', space=vmem, size = 0x12000, scoped, tag = 'internal scratch']
  %s0 = inlined_call_operand.vmem [shape: f32[2,32,16], index: 0, kind: input, shape index: {}]
  %s1 = inlined_call_operand.vmem [shape: f32[96,32], index: 1, kind: input, shape index: {}]
  %s2 = inlined_call_operand.vmem [shape: f32[64,16], index: 2, kind: input, shape index: {}]
  %s3 = inlined_call_operand.vmem [shape: f32[192,16], index: 3, kind: input, shape index: {}]
  %s4 = inlined_call_operand.vmem [shape: f32[2,32,16], index: 4, kind: output, shape index: {}]
  %s5 = sld [smem:[#allocation0]]
  $region26: #{channel_self_attention.1} parent=0
    _
  %s7 = ssub.s32 1, %s5
  %s8 = scalar_select 0, %s7, %s5
  // Predicated region
  $region2: #{channel_self_attention.1} parent=0 // pred_check
    _
  $region3: #{channel_self_attention.1} parent=0 // pred_check_branch
    %10 = sbr.rel (0) target = $region5
  $region4: #{channel_self_attention.1} parent=0 // pred_region
    _
  $region5: #{channel_self_attention.1} parent=0 // pred_fallthru
    _
  // Predicated region
  $region6: #{channel_self_attention.1} parent=0 // pred_check
    _
  $region7: #{channel_self_attention.1} parent=0 // pred_check_branch
    %12 = sbr.rel (0) target = $region9
  $region8: #{channel_self_attention.1} parent=0 // pred_region
    _
  $region9: #{channel_self_attention.1} parent=0 // pred_fallthru
    _
  // Predicated region
  $region10: #{channel_self_attention.1} parent=0 // pred_check
    _
  $region11: #{channel_self_attention.1} parent=0 // pred_check_branch
    %14 = sbr.rel (0) target = $region13
  $region12: #{channel_self_attention.1} parent=0 // pred_region
    _
  $region13: #{channel_self_attention.1} parent=0 // pred_fallthru
    _
  // Predicated region
  $region14: #{channel_self_attention.1} parent=0 // pred_check
    _
  $region15: #{channel_self_attention.1} parent=0 // pred_check_branch
    %16 = sbr.rel (0) target = $region17
  $region16: #{channel_self_attention.1} parent=0 // pred_region
    _
  $region17: #{channel_self_attention.1} parent=0 // pred_fallthru
    _
  %v17 = vld [vmem:[%s1] sm:$0xff]
  %v18 = vld [vmem:[%s1 + $0x8] sm:$0xff]
  %v19 = vld [vmem:[%s1 + $0x10] sm:$0xff]
  %v20 = vld [vmem:[%s1 + $0x18] sm:$0xff]
  %v21 = vld [vmem:[%s1 + $0x20] sm:$0xff]
  %v22 = vld [vmem:[%s1 + $0x28] sm:$0xff]
  %v23 = vld [vmem:[%s1 + $0x30] sm:$0xff]
  %v24 = vld [vmem:[%s1 + $0x38] sm:$0xff]
  %v25 = vld [vmem:[%s1 + $0x40] sm:$0xff]
  %v26 = vld [vmem:[%s1 + $0x48] sm:$0xff]
  %v27 = vld [vmem:[%s1 + $0x50] sm:$0xff]
  %v28 = vld [vmem:[%s1 + $0x58] sm:$0xff]
  %v29 = vld [vmem:[%s2] sm:$0xff]
  %v30 = vld [vmem:[%s2 + $0x8] sm:$0xff]
  %v31 = vld [vmem:[%s2 + $0x10] sm:$0xff]
  %v32 = vld [vmem:[%s2 + $0x18] sm:$0xff]
  %v33 = vld [vmem:[%s2 + $0x20] sm:$0xff]
  %v34 = vld [vmem:[%s2 + $0x28] sm:$0xff]
  %v35 = vld [vmem:[%s2 + $0x30] sm:$0xff]
  %v36 = vld [vmem:[%s2 + $0x38] sm:$0xff]
  %v37 = vld [vmem:[%s3] sm:$0xff]
  %v38 = vld [vmem:[%s3 + $0x8] sm:$0xff]
  %v39 = vld [vmem:[%s3 + $0x10] sm:$0xff]
  %v40 = vld [vmem:[%s3 + $0x18] sm:$0xff]
  %v41 = vld [vmem:[%s3 + $0x20] sm:$0xff]
  %v42 = vld [vmem:[%s3 + $0x28] sm:$0xff]
  %v43 = vld [vmem:[%s3 + $0x30] sm:$0xff]
  %v44 = vld [vmem:[%s3 + $0x38] sm:$0xff]
  %v45 = vld [vmem:[%s3 + $0x40] sm:$0xff]
  %v46 = vld [vmem:[%s3 + $0x48] sm:$0xff]
  %v47 = vld [vmem:[%s3 + $0x50] sm:$0xff]
  %v48 = vld [vmem:[%s3 + $0x58] sm:$0xff]
  %v49 = vld [vmem:[%s3 + $0x60] sm:$0xff]
  %v50 = vld [vmem:[%s3 + $0x68] sm:$0xff]
  %v51 = vld [vmem:[%s3 + $0x70] sm:$0xff]
  %v52 = vld [vmem:[%s3 + $0x78] sm:$0xff]
  %v53 = vld [vmem:[%s3 + $0x80] sm:$0xff]
  %v54 = vld [vmem:[%s3 + $0x88] sm:$0xff]
  %v55 = vld [vmem:[%s3 + $0x90] sm:$0xff]
  %v56 = vld [vmem:[%s3 + $0x98] sm:$0xff]
  %v57 = vld [vmem:[%s3 + $0xa0] sm:$0xff]
  %v58 = vld [vmem:[%s3 + $0xa8] sm:$0xff]
  %v59 = vld [vmem:[%s3 + $0xb0] sm:$0xff]
  %v60 = vld [vmem:[%s3 + $0xb8] sm:$0xff]
  %v61 = vld [vmem:[%s0] sm:$0xff]
  %v62 = vld [vmem:[%s0 + $0x8] sm:$0xff]
  %v63 = vld [vmem:[%s0 + $0x10] sm:$0xff]
  %v64 = vld [vmem:[%s0 + $0x18] sm:$0xff]
  %s65 = scalar_lea.vmem %s0, 32
  %v66 = vld [vmem:[%s65] sm:$0xff]
  %v67 = vld [vmem:[%s65 + $0x8] sm:$0xff]
  %v68 = vld [vmem:[%s65 + $0x10] sm:$0xff]
  %v69 = vld [vmem:[%s65 + $0x18] sm:$0xff]
  %vm70 = vcmask 261120
  %v72 = vsel %vm70, %v17, 0
  %v75 = vsel %vm70, %v18, 0
  %v78 = vsel %vm70, %v19, 0
  %v81 = vsel %vm70, %v20, 0
  %v84 = vsel %vm70, %v21, 0
  %v87 = vsel %vm70, %v22, 0
  %v90 = vsel %vm70, %v23, 0
  %v93 = vsel %vm70, %v24, 0
  %v96 = vsel %vm70, %v25, 0
  %v99 = vsel %vm70, %v26, 0
  %v102 = vsel %vm70, %v27, 0
  %v105 = vsel %vm70, %v28, 0
  %107 = vmatprep.subr.mxu0 0.0
  %108 = vmatpush1.msra.mxu0 0.0
  %109 = vmatprep.subr.mxu0 0.0
  %110 = vmatpush1.msra.mxu0 0.0
  %111 = vmatprep.subr.mxu0 0.0
  %112 = vmatpush1.msra.mxu0 0.0
  %113 = vmatprep.subr.mxu0 0.0
  %114 = vmatpush1.msra.mxu0 0.0
  %115 = vmatprep.subr.mxu0 0.0
  %116 = vmatpush1.msra.mxu0 0.0
  %117 = vmatprep.subr.mxu0 0.0
  %118 = vmatpush1.msra.mxu0 0.0
  %119 = vmatprep.subr.mxu0 0.0
  %120 = vmatpush1.msra.mxu0 0.0
  %121 = vmatprep.subr.mxu0 0.0
  %122 = vmatpush1.msra.mxu0 0.0
  %123 = vmatprep.subr.mxu0 0.0
  %124 = vmatpush1.msra.mxu0 0.0
  %125 = vmatprep.subr.mxu0 0.0
  %126 = vmatpush1.msra.mxu0 0.0
  %127 = vmatprep.subr.mxu0 0.0
  %128 = vmatpush1.msra.mxu0 0.0
  %129 = vmatprep.subr.mxu0 0.0
  %130 = vmatpush1.msra.mxu0 0.0
  %131 = vmatprep.subr.mxu0 0.0
  %132 = vmatpush1.msra.mxu0 %v64
  %133 = vmatprep.subr.mxu0 0.0
  %134 = vmatpush1.msra.mxu0 %v63
  %135 = vmatprep.subr.mxu0 0.0
  %136 = vmatpush1.msra.mxu0 %v62
  %137 = vmatprep.subr.mxu0 0.0
  %138 = vmatpush1.msra.mxu0 %v61
  %139 = vmatprep.subr.mxu0 0.0
  %140 = vmatpush2.msra.mxu0 0.0
  %141 = vmatprep.subr.mxu0 0.0
  %142 = vmatpush2.msra.mxu0 0.0
  %143 = vmatprep.subr.mxu0 0.0
  %144 = vmatpush2.msra.mxu0 0.0
  %145 = vmatprep.subr.mxu0 0.0
  %146 = vmatpush2.msra.mxu0 0.0
  %147 = vmatprep.subr.mxu0 0.0
  %148 = vmatpush2.msra.mxu0 0.0
  %149 = vmatprep.subr.mxu0 0.0
  %150 = vmatpush2.msra.mxu0 0.0
  %151 = vmatprep.subr.mxu0 0.0
  %152 = vmatpush2.msra.mxu0 0.0
  %153 = vmatprep.subr.mxu0 0.0
  %154 = vmatpush2.msra.mxu0 0.0
  %155 = vmatprep.subr.mxu0 0.0
  %156 = vmatpush2.msra.mxu0 0.0
  %157 = vmatprep.subr.mxu0 0.0
  %158 = vmatpush2.msra.mxu0 0.0
  %159 = vmatprep.subr.mxu0 0.0
  %160 = vmatpush2.msra.mxu0 0.0
  %161 = vmatprep.subr.mxu0 0.0
  %162 = vmatpush2.msra.mxu0 0.0
  %163 = vmatprep.subr.mxu0 0.0
  %164 = vmatpush2.msra.mxu0 0.0
  %165 = vmatprep.subr.mxu0 0.0
  %166 = vmatpush2.msra.mxu0 0.0
  %167 = vmatprep.subr.mxu0 0.0
  %168 = vmatpush2.msra.mxu0 0.0
  %169 = vmatprep.subr.mxu0 0.0
  %170 = vmatpush2.msra.mxu0 0.0
  %171 = vmatprep.mubr.f32.mxu0 0.0
  %172 = vmatmul.mubr.f32.gmra.mxu0 %v72
  %v173 = vpop.f32.mrf.mxu0
  %v174 = vadd.f32 %v37, %v173
  %v175 = vpop.f32.mrf.mxu0
  %176 = vmatprep.mubr.f32.mxu0 0.0
  %177 = vmatmul.mubr.f32.gmra.mxu0 %v75
  %v178 = vpop.f32.mrf.mxu0
  %v179 = vadd.f32 %v38, %v178
  %v180 = vpop.f32.mrf.mxu0
  %181 = vmatprep.mubr.f32.mxu0 0.0
  %182 = vmatmul.mubr.f32.gmra.mxu0 %v78
  %v183 = vpop.f32.mrf.mxu0
  %v184 = vadd.f32 %v39, %v183
  %v185 = vpop.f32.mrf.mxu0
  %186 = vmatprep.mubr.f32.mxu0 0.0
  %187 = vmatmul.mubr.f32.gmra.mxu0 %v81
  %v188 = vpop.f32.mrf.mxu0
  %v189 = vadd.f32 %v40, %v188
  %v190 = vpop.f32.mrf.mxu0
  %191 = vmatprep.mubr.f32.mxu0 0.0
  %192 = vmatmul.mubr.f32.gmra.mxu0 %v84
  %v193 = vpop.f32.mrf.mxu0
  %v194 = vadd.f32 %v41, %v193
  %v195 = vpop.f32.mrf.mxu0
  %196 = vmatprep.mubr.f32.mxu0 0.0
  %197 = vmatmul.mubr.f32.gmra.mxu0 %v87
  %v198 = vpop.f32.mrf.mxu0
  %v199 = vadd.f32 %v42, %v198
  %v200 = vpop.f32.mrf.mxu0
  %201 = vmatprep.mubr.f32.mxu0 0.0
  %202 = vmatmul.mubr.f32.gmra.mxu0 %v90
  %v203 = vpop.f32.mrf.mxu0
  %v204 = vadd.f32 %v43, %v203
  %v205 = vpop.f32.mrf.mxu0
  %206 = vmatprep.mubr.f32.mxu0 0.0
  %207 = vmatmul.mubr.f32.gmra.mxu0 %v93
  %v208 = vpop.f32.mrf.mxu0
  %v209 = vadd.f32 %v44, %v208
  %v210 = vpop.f32.mrf.mxu0
  %211 = vmatprep.mubr.f32.mxu0 0.0
  %212 = vmatmul.mubr.f32.gmra.mxu0 %v96
  %v213 = vpop.f32.mrf.mxu0
  %v214 = vadd.f32 %v45, %v213
  %v215 = vpop.f32.mrf.mxu0
  %216 = vmatprep.mubr.f32.mxu0 0.0
  %217 = vmatmul.mubr.f32.gmra.mxu0 %v99
  %v218 = vpop.f32.mrf.mxu0
  %v219 = vadd.f32 %v46, %v218
  %v220 = vpop.f32.mrf.mxu0
  %221 = vmatprep.mubr.f32.mxu0 0.0
  %222 = vmatmul.mubr.f32.gmra.mxu0 %v102
  %v223 = vpop.f32.mrf.mxu0
  %v224 = vadd.f32 %v47, %v223
  %v225 = vpop.f32.mrf.mxu0
  %226 = vmatprep.mubr.f32.mxu0 0.0
  %227 = vmatmul.mubr.f32.gmra.mxu0 %v105
  %v228 = vpop.f32.mrf.mxu0
  %v229 = vadd.f32 %v48, %v228
  %v230 = vpop.f32.mrf.mxu0
  %231 = vdwg.mxu0
  %232 = vmatprep.subr.mxu0 0.0
  %233 = vmatpush1.msra.mxu0 0.0
  %234 = vmatprep.subr.mxu0 0.0
  %235 = vmatpush1.msra.mxu0 0.0
  %236 = vmatprep.subr.mxu0 0.0
  %237 = vmatpush1.msra.mxu0 0.0
  %238 = vmatprep.subr.mxu0 0.0
  %239 = vmatpush1.msra.mxu0 0.0
  %240 = vmatprep.subr.mxu0 0.0
  %241 = vmatpush1.msra.mxu0 0.0
  %242 = vmatprep.subr.mxu0 0.0
  %243 = vmatpush1.msra.mxu0 0.0
  %244 = vmatprep.subr.mxu0 0.0
  %245 = vmatpush1.msra.mxu0 0.0
  %246 = vmatprep.subr.mxu0 0.0
  %247 = vmatpush1.msra.mxu0 0.0
  %248 = vmatprep.subr.mxu0 0.0
  %249 = vmatpush1.msra.mxu0 0.0
  %250 = vmatprep.subr.mxu0 0.0
  %251 = vmatpush1.msra.mxu0 0.0
  %252 = vmatprep.subr.mxu0 0.0
  %253 = vmatpush1.msra.mxu0 0.0
  %254 = vmatprep.subr.mxu0 0.0
  %255 = vmatpush1.msra.mxu0 0.0
  %256 = vmatprep.subr.mxu0 0.0
  %257 = vmatpush1.msra.mxu0 %v69
  %258 = vmatprep.subr.mxu0 0.0
  %259 = vmatpush1.msra.mxu0 %v68
  %260 = vmatprep.subr.mxu0 0.0
  %261 = vmatpush1.msra.mxu0 %v67
  %262 = vmatprep.subr.mxu0 0.0
  %263 = vmatpush1.msra.mxu0 %v66
  %264 = vmatprep.subr.mxu0 0.0
  %265 = vmatpush2.msra.mxu0 0.0
  %266 = vmatprep.subr.mxu0 0.0
  %267 = vmatpush2.msra.mxu0 0.0
  %268 = vmatprep.subr.mxu0 0.0
  %269 = vmatpush2.msra.mxu0 0.0
  %270 = vmatprep.subr.mxu0 0.0
  %271 = vmatpush2.msra.mxu0 0.0
  %272 = vmatprep.subr.mxu0 0.0
  %273 = vmatpush2.msra.mxu0 0.0
  %274 = vmatprep.subr.mxu0 0.0
  %275 = vmatpush2.msra.mxu0 0.0
  %276 = vmatprep.subr.mxu0 0.0
  %277 = vmatpush2.msra.mxu0 0.0
  %278 = vmatprep.subr.mxu0 0.0
  %279 = vmatpush2.msra.mxu0 0.0
  %280 = vmatprep.subr.mxu0 0.0
  %281 = vmatpush2.msra.mxu0 0.0
  %282 = vmatprep.subr.mxu0 0.0
  %283 = vmatpush2.msra.mxu0 0.0
  %284 = vmatprep.subr.mxu0 0.0
  %285 = vmatpush2.msra.mxu0 0.0
  %286 = vmatprep.subr.mxu0 0.0
  %287 = vmatpush2.msra.mxu0 0.0
  %288 = vmatprep.subr.mxu0 0.0
  %289 = vmatpush2.msra.mxu0 0.0
  %290 = vmatprep.subr.mxu0 0.0
  %291 = vmatpush2.msra.mxu0 0.0
  %292 = vmatprep.subr.mxu0 0.0
  %293 = vmatpush2.msra.mxu0 0.0
  %294 = vmatprep.subr.mxu0 0.0
  %295 = vmatpush2.msra.mxu0 0.0
  %296 = vmatprep.mubr.f32.mxu0 0.0
  %297 = vmatmul.mubr.f32.gmra.mxu0 %v72
  %v298 = vpop.f32.mrf.mxu0
  %v299 = vadd.f32 %v37, %v298
  %v300 = vpop.f32.mrf.mxu0
  %301 = vmatprep.mubr.f32.mxu0 0.0
  %302 = vmatmul.mubr.f32.gmra.mxu0 %v75
  %v303 = vpop.f32.mrf.mxu0
  %v304 = vadd.f32 %v38, %v303
  %v305 = vpop.f32.mrf.mxu0
  %306 = vmatprep.mubr.f32.mxu0 0.0
  %307 = vmatmul.mubr.f32.gmra.mxu0 %v78
  %v308 = vpop.f32.mrf.mxu0
  %v309 = vadd.f32 %v39, %v308
  %v310 = vpop.f32.mrf.mxu0
  %311 = vmatprep.mubr.f32.mxu0 0.0
  %312 = vmatmul.mubr.f32.gmra.mxu0 %v81
  %v313 = vpop.f32.mrf.mxu0
  %v314 = vadd.f32 %v40, %v313
  %v315 = vpop.f32.mrf.mxu0
  %316 = vmatprep.mubr.f32.mxu0 0.0
  %317 = vmatmul.mubr.f32.gmra.mxu0 %v84
  %v318 = vpop.f32.mrf.mxu0
  %v319 = vadd.f32 %v41, %v318
  %v320 = vpop.f32.mrf.mxu0
  %321 = vmatprep.mubr.f32.mxu0 0.0
  %322 = vmatmul.mubr.f32.gmra.mxu0 %v87
  %v323 = vpop.f32.mrf.mxu0
  %v324 = vadd.f32 %v42, %v323
  %v325 = vpop.f32.mrf.mxu0
  %326 = vmatprep.mubr.f32.mxu0 0.0
  %327 = vmatmul.mubr.f32.gmra.mxu0 %v90
  %v328 = vpop.f32.mrf.mxu0
  %v329 = vadd.f32 %v43, %v328
  %v330 = vpop.f32.mrf.mxu0
  %331 = vmatprep.mubr.f32.mxu0 0.0
  %332 = vmatmul.mubr.f32.gmra.mxu0 %v93
  %v333 = vpop.f32.mrf.mxu0
  %v334 = vadd.f32 %v44, %v333
  %v335 = vpop.f32.mrf.mxu0
  %336 = vmatprep.mubr.f32.mxu0 0.0
  %337 = vmatmul.mubr.f32.gmra.mxu0 %v96
  %v338 = vpop.f32.mrf.mxu0
  %v339 = vadd.f32 %v45, %v338
  %v340 = vpop.f32.mrf.mxu0
  %341 = vmatprep.mubr.f32.mxu0 0.0
  %342 = vmatmul.mubr.f32.gmra.mxu0 %v99
  %v343 = vpop.f32.mrf.mxu0
  %v344 = vadd.f32 %v46, %v343
  %v345 = vpop.f32.mrf.mxu0
  %346 = vmatprep.mubr.f32.mxu0 0.0
  %347 = vmatmul.mubr.f32.gmra.mxu0 %v102
  %v348 = vpop.f32.mrf.mxu0
  %v349 = vadd.f32 %v47, %v348
  %v350 = vpop.f32.mrf.mxu0
  %351 = vmatprep.mubr.f32.mxu0 0.0
  %352 = vmatmul.mubr.f32.gmra.mxu0 %v105
  %v353 = vpop.f32.mrf.mxu0
  %v354 = vadd.f32 %v48, %v353
  %v355 = vpop.f32.mrf.mxu0
  %356 = vdwg.mxu0
  %357 = vxpose.xlu0.b32.start [1/16] %v174, 128
  %358 = vxpose.xlu0.b32.cont [2/16] %v179, 128
  %359 = vxpose.xlu0.b32.cont [3/16] 0.0, 128
  %360 = vxpose.xlu0.b32.cont [4/16] 0.0, 128
  %361 = vxpose.xlu0.b32.cont [5/16] 0.0, 128
  %362 = vxpose.xlu0.b32.cont [6/16] 0.0, 128
  %363 = vxpose.xlu0.b32.cont [7/16] 0.0, 128
  %364 = vxpose.xlu0.b32.cont [8/16] 0.0, 128
  %365 = vxpose.xlu0.b32.cont [9/16] 0.0, 128
  %366 = vxpose.xlu0.b32.cont [10/16] 0.0, 128
  %367 = vxpose.xlu0.b32.cont [11/16] 0.0, 128
  %368 = vxpose.xlu0.b32.cont [12/16] 0.0, 128
  %369 = vxpose.xlu0.b32.cont [13/16] 0.0, 128
  %370 = vxpose.xlu0.b32.cont [14/16] 0.0, 128
  %371 = vxpose.xlu0.b32.cont [15/16] 0.0, 128
  %372 = vxpose.xlu0.b32.end [16/16] 0.0, 128
  %v373 = vpop.trf.xlu0
  %v374 = vpop.trf.xlu0
  %v375 = vpop.trf.xlu0
  %v376 = vpop.trf.xlu0
  %v377 = vpop.trf.xlu0
  %v378 = vpop.trf.xlu0
  %v379 = vpop.trf.xlu0
  %v380 = vpop.trf.xlu0
  %v381 = vpop.trf.xlu0
  %v382 = vpop.trf.xlu0
  %v383 = vpop.trf.xlu0
  %v384 = vpop.trf.xlu0
  %v385 = vpop.trf.xlu0
  %v386 = vpop.trf.xlu0
  %v387 = vpop.trf.xlu0
  %v388 = vpop.trf.xlu0
  %vm389 = vcmask 130048
  %v391 = vsel %vm389, %v373, 0
  %v394 = vsel %vm389, %v374, 0
  %396 = vmatprep.subr.mxu0 0.0
  %397 = vmatpush1.msra.mxu0 0.0
  %398 = vmatprep.subr.mxu0 0.0
  %399 = vmatpush1.msra.mxu0 0.0
  %400 = vmatprep.subr.mxu0 0.0
  %401 = vmatpush1.msra.mxu0 0.0
  %402 = vmatprep.subr.mxu0 0.0
  %403 = vmatpush1.msra.mxu0 0.0
  %404 = vmatprep.subr.mxu0 0.0
  %405 = vmatpush1.msra.mxu0 0.0
  %406 = vmatprep.subr.mxu0 0.0
  %407 = vmatpush1.msra.mxu0 0.0
  %408 = vmatprep.subr.mxu0 0.0
  %409 = vmatpush1.msra.mxu0 0.0
  %410 = vmatprep.subr.mxu0 0.0
  %411 = vmatpush1.msra.mxu0 0.0
  %412 = vmatprep.subr.mxu0 0.0
  %413 = vmatpush1.msra.mxu0 0.0
  %414 = vmatprep.subr.mxu0 0.0
  %415 = vmatpush1.msra.mxu0 0.0
  %416 = vmatprep.subr.mxu0 0.0
  %417 = vmatpush1.msra.mxu0 0.0
  %418 = vmatprep.subr.mxu0 0.0
  %419 = vmatpush1.msra.mxu0 0.0
  %420 = vmatprep.subr.mxu0 0.0
  %421 = vmatpush1.msra.mxu0 0.0
  %422 = vmatprep.subr.mxu0 0.0
  %423 = vmatpush1.msra.mxu0 0.0
  %424 = vmatprep.subr.mxu0 0.0
  %425 = vmatpush1.msra.mxu0 %v199
  %426 = vmatprep.subr.mxu0 0.0
  %427 = vmatpush1.msra.mxu0 %v194
  %428 = vmatprep.subr.mxu0 0.0
  %429 = vmatpush2.msra.mxu0 0.0
  %430 = vmatprep.subr.mxu0 0.0
  %431 = vmatpush2.msra.mxu0 0.0
  %432 = vmatprep.subr.mxu0 0.0
  %433 = vmatpush2.msra.mxu0 0.0
  %434 = vmatprep.subr.mxu0 0.0
  %435 = vmatpush2.msra.mxu0 0.0
  %436 = vmatprep.subr.mxu0 0.0
  %437 = vmatpush2.msra.mxu0 0.0
  %438 = vmatprep.subr.mxu0 0.0
  %439 = vmatpush2.msra.mxu0 0.0
  %440 = vmatprep.subr.mxu0 0.0
  %441 = vmatpush2.msra.mxu0 0.0
  %442 = vmatprep.subr.mxu0 0.0
  %443 = vmatpush2.msra.mxu0 0.0
  %444 = vmatprep.subr.mxu0 0.0
  %445 = vmatpush2.msra.mxu0 0.0
  %446 = vmatprep.subr.mxu0 0.0
  %447 = vmatpush2.msra.mxu0 0.0
  %448 = vmatprep.subr.mxu0 0.0
  %449 = vmatpush2.msra.mxu0 0.0
  %450 = vmatprep.subr.mxu0 0.0
  %451 = vmatpush2.msra.mxu0 0.0
  %452 = vmatprep.subr.mxu0 0.0
  %453 = vmatpush2.msra.mxu0 0.0
  %454 = vmatprep.subr.mxu0 0.0
  %455 = vmatpush2.msra.mxu0 0.0
  %456 = vmatprep.subr.mxu0 0.0
  %457 = vmatpush2.msra.mxu0 0.0
  %458 = vmatprep.subr.mxu0 0.0
  %459 = vmatpush2.msra.mxu0 0.0
  %460 = vmatprep.mubr.f32.mxu0 0.0
  %461 = vmatmul.mubr.f32.gmra.mxu0 %v391
  %v462 = vpop.f32.mrf.mxu0
  %v463 = vadd.f32 0.0, %v462
  %v464 = vpop.f32.mrf.mxu0
  %465 = vmatprep.mubr.f32.mxu0 0.0
  %466 = vmatmul.mubr.f32.gmra.mxu0 %v394
  %v467 = vpop.f32.mrf.mxu0
  %v468 = vadd.f32 0.0, %v467
  %v469 = vpop.f32.mrf.mxu0
  %470 = vdwg.mxu0
  %471 = vxpose.xlu0.b32.start [1/16] %v184, 128
  %472 = vxpose.xlu0.b32.cont [2/16] %v189, 128
  %473 = vxpose.xlu0.b32.cont [3/16] 0.0, 128
  %474 = vxpose.xlu0.b32.cont [4/16] 0.0, 128
  %475 = vxpose.xlu0.b32.cont [5/16] 0.0, 128
  %476 = vxpose.xlu0.b32.cont [6/16] 0.0, 128
  %477 = vxpose.xlu0.b32.cont [7/16] 0.0, 128
  %478 = vxpose.xlu0.b32.cont [8/16] 0.0, 128
  %479 = vxpose.xlu0.b32.cont [9/16] 0.0, 128
  %480 = vxpose.xlu0.b32.cont [10/16] 0.0, 128
  %481 = vxpose.xlu0.b32.cont [11/16] 0.0, 128
  %482 = vxpose.xlu0.b32.cont [12/16] 0.0, 128
  %483 = vxpose.xlu0.b32.cont [13/16] 0.0, 128
  %484 = vxpose.xlu0.b32.cont [14/16] 0.0, 128
  %485 = vxpose.xlu0.b32.cont [15/16] 0.0, 128
  %486 = vxpose.xlu0.b32.end [16/16] 0.0, 128
  %v487 = vpop.trf.xlu0
  %v488 = vpop.trf.xlu0
  %v489 = vpop.trf.xlu0
  %v490 = vpop.trf.xlu0
  %v491 = vpop.trf.xlu0
  %v492 = vpop.trf.xlu0
  %v493 = vpop.trf.xlu0
  %v494 = vpop.trf.xlu0
  %v495 = vpop.trf.xlu0
  %v496 = vpop.trf.xlu0
  %v497 = vpop.trf.xlu0
  %v498 = vpop.trf.xlu0
  %v499 = vpop.trf.xlu0
  %v500 = vpop.trf.xlu0
  %v501 = vpop.trf.xlu0
  %v502 = vpop.trf.xlu0
  %v504 = vsel %vm389, %v487, 0
  %v507 = vsel %vm389, %v488, 0
  %509 = vmatprep.subr.mxu0 0.0
  %510 = vmatpush1.msra.mxu0 0.0
  %511 = vmatprep.subr.mxu0 0.0
  %512 = vmatpush1.msra.mxu0 0.0
  %513 = vmatprep.subr.mxu0 0.0
  %514 = vmatpush1.msra.mxu0 0.0
  %515 = vmatprep.subr.mxu0 0.0
  %516 = vmatpush1.msra.mxu0 0.0
  %517 = vmatprep.subr.mxu0 0.0
  %518 = vmatpush1.msra.mxu0 0.0
  %519 = vmatprep.subr.mxu0 0.0
  %520 = vmatpush1.msra.mxu0 0.0
  %521 = vmatprep.subr.mxu0 0.0
  %522 = vmatpush1.msra.mxu0 0.0
  %523 = vmatprep.subr.mxu0 0.0
  %524 = vmatpush1.msra.mxu0 0.0
  %525 = vmatprep.subr.mxu0 0.0
  %526 = vmatpush1.msra.mxu0 0.0
  %527 = vmatprep.subr.mxu0 0.0
  %528 = vmatpush1.msra.mxu0 0.0
  %529 = vmatprep.subr.mxu0 0.0
  %530 = vmatpush1.msra.mxu0 0.0
  %531 = vmatprep.subr.mxu0 0.0
  %532 = vmatpush1.msra.mxu0 0.0
  %533 = vmatprep.subr.mxu0 0.0
  %534 = vmatpush1.msra.mxu0 0.0
  %535 = vmatprep.subr.mxu0 0.0
  %536 = vmatpush1.msra.mxu0 0.0
  %537 = vmatprep.subr.mxu0 0.0
  %538 = vmatpush1.msra.mxu0 %v209
  %539 = vmatprep.subr.mxu0 0.0
  %540 = vmatpush1.msra.mxu0 %v204
  %541 = vmatprep.subr.mxu0 0.0
  %542 = vmatpush2.msra.mxu0 0.0
  %543 = vmatprep.subr.mxu0 0.0
  %544 = vmatpush2.msra.mxu0 0.0
  %545 = vmatprep.subr.mxu0 0.0
  %546 = vmatpush2.msra.mxu0 0.0
  %547 = vmatprep.subr.mxu0 0.0
  %548 = vmatpush2.msra.mxu0 0.0
  %549 = vmatprep.subr.mxu0 0.0
  %550 = vmatpush2.msra.mxu0 0.0
  %551 = vmatprep.subr.mxu0 0.0
  %552 = vmatpush2.msra.mxu0 0.0
  %553 = vmatprep.subr.mxu0 0.0
  %554 = vmatpush2.msra.mxu0 0.0
  %555 = vmatprep.subr.mxu0 0.0
  %556 = vmatpush2.msra.mxu0 0.0
  %557 = vmatprep.subr.mxu0 0.0
  %558 = vmatpush2.msra.mxu0 0.0
  %559 = vmatprep.subr.mxu0 0.0
  %560 = vmatpush2.msra.mxu0 0.0
  %561 = vmatprep.subr.mxu0 0.0
  %562 = vmatpush2.msra.mxu0 0.0
  %563 = vmatprep.subr.mxu0 0.0
  %564 = vmatpush2.msra.mxu0 0.0
  %565 = vmatprep.subr.mxu0 0.0
  %566 = vmatpush2.msra.mxu0 0.0
  %567 = vmatprep.subr.mxu0 0.0
  %568 = vmatpush2.msra.mxu0 0.0
  %569 = vmatprep.subr.mxu0 0.0
  %570 = vmatpush2.msra.mxu0 0.0
  %571 = vmatprep.subr.mxu0 0.0
  %572 = vmatpush2.msra.mxu0 0.0
  %573 = vmatprep.mubr.f32.mxu0 0.0
  %574 = vmatmul.mubr.f32.gmra.mxu0 %v504
  %v575 = vpop.f32.mrf.mxu0
  %v576 = vadd.f32 0.0, %v575
  %v577 = vpop.f32.mrf.mxu0
  %578 = vmatprep.mubr.f32.mxu0 0.0
  %579 = vmatmul.mubr.f32.gmra.mxu0 %v507
  %v580 = vpop.f32.mrf.mxu0
  %v581 = vadd.f32 0.0, %v580
  %v582 = vpop.f32.mrf.mxu0
  %583 = vdwg.mxu0
  %584 = vxpose.xlu0.b32.start [1/16] %v299, 128
  %585 = vxpose.xlu0.b32.cont [2/16] %v304, 128
  %586 = vxpose.xlu0.b32.cont [3/16] 0.0, 128
  %587 = vxpose.xlu0.b32.cont [4/16] 0.0, 128
  %588 = vxpose.xlu0.b32.cont [5/16] 0.0, 128
  %589 = vxpose.xlu0.b32.cont [6/16] 0.0, 128
  %590 = vxpose.xlu0.b32.cont [7/16] 0.0, 128
  %591 = vxpose.xlu0.b32.cont [8/16] 0.0, 128
  %592 = vxpose.xlu0.b32.cont [9/16] 0.0, 128
  %593 = vxpose.xlu0.b32.cont [10/16] 0.0, 128
  %594 = vxpose.xlu0.b32.cont [11/16] 0.0, 128
  %595 = vxpose.xlu0.b32.cont [12/16] 0.0, 128
  %596 = vxpose.xlu0.b32.cont [13/16] 0.0, 128
  %597 = vxpose.xlu0.b32.cont [14/16] 0.0, 128
  %598 = vxpose.xlu0.b32.cont [15/16] 0.0, 128
  %599 = vxpose.xlu0.b32.end [16/16] 0.0, 128
  %v600 = vpop.trf.xlu0
  %v601 = vpop.trf.xlu0
  %v602 = vpop.trf.xlu0
  %v603 = vpop.trf.xlu0
  %v604 = vpop.trf.xlu0
  %v605 = vpop.trf.xlu0
  %v606 = vpop.trf.xlu0
  %v607 = vpop.trf.xlu0
  %v608 = vpop.trf.xlu0
  %v609 = vpop.trf.xlu0
  %v610 = vpop.trf.xlu0
  %v611 = vpop.trf.xlu0
  %v612 = vpop.trf.xlu0
  %v613 = vpop.trf.xlu0
  %v614 = vpop.trf.xlu0
  %v615 = vpop.trf.xlu0
  %v617 = vsel %vm389, %v600, 0
  %v620 = vsel %vm389, %v601, 0
  %622 = vmatprep.subr.mxu0 0.0
  %623 = vmatpush1.msra.mxu0 0.0
  %624 = vmatprep.subr.mxu0 0.0
  %625 = vmatpush1.msra.mxu0 0.0
  %626 = vmatprep.subr.mxu0 0.0
  %627 = vmatpush1.msra.mxu0 0.0
  %628 = vmatprep.subr.mxu0 0.0
  %629 = vmatpush1.msra.mxu0 0.0
  %630 = vmatprep.subr.mxu0 0.0
  %631 = vmatpush1.msra.mxu0 0.0
  %632 = vmatprep.subr.mxu0 0.0
  %633 = vmatpush1.msra.mxu0 0.0
  %634 = vmatprep.subr.mxu0 0.0
  %635 = vmatpush1.msra.mxu0 0.0
  %636 = vmatprep.subr.mxu0 0.0
  %637 = vmatpush1.msra.mxu0 0.0
  %638 = vmatprep.subr.mxu0 0.0
  %639 = vmatpush1.msra.mxu0 0.0
  %640 = vmatprep.subr.mxu0 0.0
  %641 = vmatpush1.msra.mxu0 0.0
  %642 = vmatprep.subr.mxu0 0.0
  %643 = vmatpush1.msra.mxu0 0.0
  %644 = vmatprep.subr.mxu0 0.0
  %645 = vmatpush1.msra.mxu0 0.0
  %646 = vmatprep.subr.mxu0 0.0
  %647 = vmatpush1.msra.mxu0 0.0
  %648 = vmatprep.subr.mxu0 0.0
  %649 = vmatpush1.msra.mxu0 0.0
  %650 = vmatprep.subr.mxu0 0.0
  %651 = vmatpush1.msra.mxu0 %v324
  %652 = vmatprep.subr.mxu0 0.0
  %653 = vmatpush1.msra.mxu0 %v319
  %654 = vmatprep.subr.mxu0 0.0
  %655 = vmatpush2.msra.mxu0 0.0
  %656 = vmatprep.subr.mxu0 0.0
  %657 = vmatpush2.msra.mxu0 0.0
  %658 = vmatprep.subr.mxu0 0.0
  %659 = vmatpush2.msra.mxu0 0.0
  %660 = vmatprep.subr.mxu0 0.0
  %661 = vmatpush2.msra.mxu0 0.0
  %662 = vmatprep.subr.mxu0 0.0
  %663 = vmatpush2.msra.mxu0 0.0
  %664 = vmatprep.subr.mxu0 0.0
  %665 = vmatpush2.msra.mxu0 0.0
  %666 = vmatprep.subr.mxu0 0.0
  %667 = vmatpush2.msra.mxu0 0.0
  %668 = vmatprep.subr.mxu0 0.0
  %669 = vmatpush2.msra.mxu0 0.0
  %670 = vmatprep.subr.mxu0 0.0
  %671 = vmatpush2.msra.mxu0 0.0
  %672 = vmatprep.subr.mxu0 0.0
  %673 = vmatpush2.msra.mxu0 0.0
  %674 = vmatprep.subr.mxu0 0.0
  %675 = vmatpush2.msra.mxu0 0.0
  %676 = vmatprep.subr.mxu0 0.0
  %677 = vmatpush2.msra.mxu0 0.0
  %678 = vmatprep.subr.mxu0 0.0
  %679 = vmatpush2.msra.mxu0 0.0
  %680 = vmatprep.subr.mxu0 0.0
  %681 = vmatpush2.msra.mxu0 0.0
  %682 = vmatprep.subr.mxu0 0.0
  %683 = vmatpush2.msra.mxu0 0.0
  %684 = vmatprep.subr.mxu0 0.0
  %685 = vmatpush2.msra.mxu0 0.0
  %686 = vmatprep.mubr.f32.mxu0 0.0
  %687 = vmatmul.mubr.f32.gmra.mxu0 %v617
  %v688 = vpop.f32.mrf.mxu0
  %v689 = vadd.f32 0.0, %v688
  %v690 = vpop.f32.mrf.mxu0
  %691 = vmatprep.mubr.f32.mxu0 0.0
  %692 = vmatmul.mubr.f32.gmra.mxu0 %v620
  %v693 = vpop.f32.mrf.mxu0
  %v694 = vadd.f32 0.0, %v693
  %v695 = vpop.f32.mrf.mxu0
  %696 = vdwg.mxu0
  %697 = vxpose.xlu0.b32.start [1/16] %v309, 128
  %698 = vxpose.xlu0.b32.cont [2/16] %v314, 128
  %699 = vxpose.xlu0.b32.cont [3/16] 0.0, 128
  %700 = vxpose.xlu0.b32.cont [4/16] 0.0, 128
  %701 = vxpose.xlu0.b32.cont [5/16] 0.0, 128
  %702 = vxpose.xlu0.b32.cont [6/16] 0.0, 128
  %703 = vxpose.xlu0.b32.cont [7/16] 0.0, 128
  %704 = vxpose.xlu0.b32.cont [8/16] 0.0, 128
  %705 = vxpose.xlu0.b32.cont [9/16] 0.0, 128
  %706 = vxpose.xlu0.b32.cont [10/16] 0.0, 128
  %707 = vxpose.xlu0.b32.cont [11/16] 0.0, 128
  %708 = vxpose.xlu0.b32.cont [12/16] 0.0, 128
  %709 = vxpose.xlu0.b32.cont [13/16] 0.0, 128
  %710 = vxpose.xlu0.b32.cont [14/16] 0.0, 128
  %711 = vxpose.xlu0.b32.cont [15/16] 0.0, 128
  %712 = vxpose.xlu0.b32.end [16/16] 0.0, 128
  %v713 = vpop.trf.xlu0
  %v714 = vpop.trf.xlu0
  %v715 = vpop.trf.xlu0
  %v716 = vpop.trf.xlu0
  %v717 = vpop.trf.xlu0
  %v718 = vpop.trf.xlu0
  %v719 = vpop.trf.xlu0
  %v720 = vpop.trf.xlu0
  %v721 = vpop.trf.xlu0
  %v722 = vpop.trf.xlu0
  %v723 = vpop.trf.xlu0
  %v724 = vpop.trf.xlu0
  %v725 = vpop.trf.xlu0
  %v726 = vpop.trf.xlu0
  %v727 = vpop.trf.xlu0
  %v728 = vpop.trf.xlu0
  %v730 = vsel %vm389, %v713, 0
  %v733 = vsel %vm389, %v714, 0
  %735 = vmatprep.subr.mxu0 0.0
  %736 = vmatpush1.msra.mxu0 0.0
  %737 = vmatprep.subr.mxu0 0.0
  %738 = vmatpush1.msra.mxu0 0.0
  %739 = vmatprep.subr.mxu0 0.0
  %740 = vmatpush1.msra.mxu0 0.0
  %741 = vmatprep.subr.mxu0 0.0
  %742 = vmatpush1.msra.mxu0 0.0
  %743 = vmatprep.subr.mxu0 0.0
  %744 = vmatpush1.msra.mxu0 0.0
  %745 = vmatprep.subr.mxu0 0.0
  %746 = vmatpush1.msra.mxu0 0.0
  %747 = vmatprep.subr.mxu0 0.0
  %748 = vmatpush1.msra.mxu0 0.0
  %749 = vmatprep.subr.mxu0 0.0
  %750 = vmatpush1.msra.mxu0 0.0
  %751 = vmatprep.subr.mxu0 0.0
  %752 = vmatpush1.msra.mxu0 0.0
  %753 = vmatprep.subr.mxu0 0.0
  %754 = vmatpush1.msra.mxu0 0.0
  %755 = vmatprep.subr.mxu0 0.0
  %756 = vmatpush1.msra.mxu0 0.0
  %757 = vmatprep.subr.mxu0 0.0
  %758 = vmatpush1.msra.mxu0 0.0
  %759 = vmatprep.subr.mxu0 0.0
  %760 = vmatpush1.msra.mxu0 0.0
  %761 = vmatprep.subr.mxu0 0.0
  %762 = vmatpush1.msra.mxu0 0.0
  %763 = vmatprep.subr.mxu0 0.0
  %764 = vmatpush1.msra.mxu0 %v334
  %765 = vmatprep.subr.mxu0 0.0
  %766 = vmatpush1.msra.mxu0 %v329
  %767 = vmatprep.subr.mxu0 0.0
  %768 = vmatpush2.msra.mxu0 0.0
  %769 = vmatprep.subr.mxu0 0.0
  %770 = vmatpush2.msra.mxu0 0.0
  %771 = vmatprep.subr.mxu0 0.0
  %772 = vmatpush2.msra.mxu0 0.0
  %773 = vmatprep.subr.mxu0 0.0
  %774 = vmatpush2.msra.mxu0 0.0
  %775 = vmatprep.subr.mxu0 0.0
  %776 = vmatpush2.msra.mxu0 0.0
  %777 = vmatprep.subr.mxu0 0.0
  %778 = vmatpush2.msra.mxu0 0.0
  %779 = vmatprep.subr.mxu0 0.0
  %780 = vmatpush2.msra.mxu0 0.0
  %781 = vmatprep.subr.mxu0 0.0
  %782 = vmatpush2.msra.mxu0 0.0
  %783 = vmatprep.subr.mxu0 0.0
  %784 = vmatpush2.msra.mxu0 0.0
  %785 = vmatprep.subr.mxu0 0.0
  %786 = vmatpush2.msra.mxu0 0.0
  %787 = vmatprep.subr.mxu0 0.0
  %788 = vmatpush2.msra.mxu0 0.0
  %789 = vmatprep.subr.mxu0 0.0
  %790 = vmatpush2.msra.mxu0 0.0
  %791 = vmatprep.subr.mxu0 0.0
  %792 = vmatpush2.msra.mxu0 0.0
  %793 = vmatprep.subr.mxu0 0.0
  %794 = vmatpush2.msra.mxu0 0.0
  %795 = vmatprep.subr.mxu0 0.0
  %796 = vmatpush2.msra.mxu0 0.0
  %797 = vmatprep.subr.mxu0 0.0
  %798 = vmatpush2.msra.mxu0 0.0
  %799 = vmatprep.mubr.f32.mxu0 0.0
  %800 = vmatmul.mubr.f32.gmra.mxu0 %v730
  %v801 = vpop.f32.mrf.mxu0
  %v802 = vadd.f32 0.0, %v801
  %v803 = vpop.f32.mrf.mxu0
  %804 = vmatprep.mubr.f32.mxu0 0.0
  %805 = vmatmul.mubr.f32.gmra.mxu0 %v733
  %v806 = vpop.f32.mrf.mxu0
  %v807 = vadd.f32 0.0, %v806
  %v808 = vpop.f32.mrf.mxu0
  %809 = vdwg.mxu0
  %v810 = vsel %vm389, %v463, -inf
  %811 = vmax.xlane.f32.xlu0 %v810
  %v812 = vpop.xlane.xlu0 %811
  %v813 = vsel %vm389, %v468, -inf
  %814 = vmax.xlane.f32.xlu0 %v813
  %v815 = vpop.xlane.xlu0 %814
  %v816 = vsel %vm389, %v576, -inf
  %817 = vmax.xlane.f32.xlu0 %v816
  %v818 = vpop.xlane.xlu0 %817
  %v819 = vsel %vm389, %v581, -inf
  %820 = vmax.xlane.f32.xlu0 %v819
  %v821 = vpop.xlane.xlu0 %820
  %v822 = vsel %vm389, %v689, -inf
  %823 = vmax.xlane.f32.xlu0 %v822
  %v824 = vpop.xlane.xlu0 %823
  %v825 = vsel %vm389, %v694, -inf
  %826 = vmax.xlane.f32.xlu0 %v825
  %v827 = vpop.xlane.xlu0 %826
  %v828 = vsel %vm389, %v802, -inf
  %829 = vmax.xlane.f32.xlu0 %v828
  %v830 = vpop.xlane.xlu0 %829
  %v831 = vsel %vm389, %v807, -inf
  %832 = vmax.xlane.f32.xlu0 %v831
  %v833 = vpop.xlane.xlu0 %832
  %v834 = vsub.f32 %v463, %v812
  %v835 = vsub.f32 %v468, %v815
  %v836 = vsub.f32 %v576, %v818
  %v837 = vsub.f32 %v581, %v821
  %v838 = vsub.f32 %v689, %v824
  %v839 = vsub.f32 %v694, %v827
  %v840 = vsub.f32 %v802, %v830
  %v841 = vsub.f32 %v807, %v833
  %v842 = vmul.f32 %v834, 1.442695
  %v843 = vpow.pop %v842
  %v844 = vmul.f32 %v835, 1.442695
  %v845 = vpow.pop %v844
  %v846 = vmul.f32 %v836, 1.442695
  %v847 = vpow.pop %v846
  %v848 = vmul.f32 %v837, 1.442695
  %v849 = vpow.pop %v848
  %v850 = vmul.f32 %v838, 1.442695
  %v851 = vpow.pop %v850
  %v852 = vmul.f32 %v839, 1.442695
  %v853 = vpow.pop %v852
  %v854 = vmul.f32 %v840, 1.442695
  %v855 = vpow.pop %v854
  %v856 = vmul.f32 %v841, 1.442695
  %v857 = vpow.pop %v856
  %v858 = vsel %vm389, %v843, 0.0
  %859 = vadd.xlane.f32.xlu0 %v858
  %v860 = vpop.xlane.xlu0 %859
  %v861 = vsel %vm389, %v845, 0.0
  %862 = vadd.xlane.f32.xlu0 %v861
  %v863 = vpop.xlane.xlu0 %862
  %v864 = vsel %vm389, %v847, 0.0
  %865 = vadd.xlane.f32.xlu0 %v864
  %v866 = vpop.xlane.xlu0 %865
  %v867 = vsel %vm389, %v849, 0.0
  %868 = vadd.xlane.f32.xlu0 %v867
  %v869 = vpop.xlane.xlu0 %868
  %v870 = vsel %vm389, %v851, 0.0
  %871 = vadd.xlane.f32.xlu0 %v870
  %v872 = vpop.xlane.xlu0 %871
  %v873 = vsel %vm389, %v853, 0.0
  %874 = vadd.xlane.f32.xlu0 %v873
  %v875 = vpop.xlane.xlu0 %874
  %v876 = vsel %vm389, %v855, 0.0
  %877 = vadd.xlane.f32.xlu0 %v876
  %v878 = vpop.xlane.xlu0 %877
  %v879 = vsel %vm389, %v857, 0.0
  %880 = vadd.xlane.f32.xlu0 %v879
  %v881 = vpop.xlane.xlu0 %880
  %v882 = vrcp.pop %v860
  %v883 = vmul.f32 %v843, %v882
  %v884 = vrcp.pop %v863
  %v885 = vmul.f32 %v845, %v884
  %v886 = vrcp.pop %v866
  %v887 = vmul.f32 %v847, %v886
  %v888 = vrcp.pop %v869
  %v889 = vmul.f32 %v849, %v888
  %v890 = vrcp.pop %v872
  %v891 = vmul.f32 %v851, %v890
  %v892 = vrcp.pop %v875
  %v893 = vmul.f32 %v853, %v892
  %v894 = vrcp.pop %v878
  %v895 = vmul.f32 %v855, %v894
  %v896 = vrcp.pop %v881
  %v897 = vmul.f32 %v857, %v896
  %v899 = vsel %vm389, %v214, 0
  %v902 = vsel %vm389, %v219, 0
  %v905 = vsel %vm389, %v883, 0
  %v908 = vsel %vm389, %v885, 0
  %910 = vmatprep.subr.mxu0 0.0
  %911 = vmatpush1.xpose.msra.mxu0 0.0
  %912 = vmatprep.subr.mxu0 0.0
  %913 = vmatpush1.xpose.msra.mxu0 0.0
  %914 = vmatprep.subr.mxu0 0.0
  %915 = vmatpush1.xpose.msra.mxu0 0.0
  %916 = vmatprep.subr.mxu0 0.0
  %917 = vmatpush1.xpose.msra.mxu0 0.0
  %918 = vmatprep.subr.mxu0 0.0
  %919 = vmatpush1.xpose.msra.mxu0 0.0
  %920 = vmatprep.subr.mxu0 0.0
  %921 = vmatpush1.xpose.msra.mxu0 0.0
  %922 = vmatprep.subr.mxu0 0.0
  %923 = vmatpush1.xpose.msra.mxu0 0.0
  %924 = vmatprep.subr.mxu0 0.0
  %925 = vmatpush1.xpose.msra.mxu0 0.0
  %926 = vmatprep.subr.mxu0 0.0
  %927 = vmatpush1.xpose.msra.mxu0 0.0
  %928 = vmatprep.subr.mxu0 0.0
  %929 = vmatpush1.xpose.msra.mxu0 0.0
  %930 = vmatprep.subr.mxu0 0.0
  %931 = vmatpush1.xpose.msra.mxu0 0.0
  %932 = vmatprep.subr.mxu0 0.0
  %933 = vmatpush1.xpose.msra.mxu0 0.0
  %934 = vmatprep.subr.mxu0 0.0
  %935 = vmatpush1.xpose.msra.mxu0 0.0
  %936 = vmatprep.subr.mxu0 0.0
  %937 = vmatpush1.xpose.msra.mxu0 0.0
  %938 = vmatprep.subr.mxu0 0.0
  %939 = vmatpush1.xpose.msra.mxu0 %v908
  %940 = vmatprep.subr.mxu0 0.0
  %941 = vmatpush1.xpose.msra.mxu0 %v905
  %942 = vmatprep.subr.mxu0 0.0
  %943 = vmatpush2.xpose.msra.mxu0 0.0
  %944 = vmatprep.subr.mxu0 0.0
  %945 = vmatpush2.xpose.msra.mxu0 0.0
  %946 = vmatprep.subr.mxu0 0.0
  %947 = vmatpush2.xpose.msra.mxu0 0.0
  %948 = vmatprep.subr.mxu0 0.0
  %949 = vmatpush2.xpose.msra.mxu0 0.0
  %950 = vmatprep.subr.mxu0 0.0
  %951 = vmatpush2.xpose.msra.mxu0 0.0
  %952 = vmatprep.subr.mxu0 0.0
  %953 = vmatpush2.xpose.msra.mxu0 0.0
  %954 = vmatprep.subr.mxu0 0.0
  %955 = vmatpush2.xpose.msra.mxu0 0.0
  %956 = vmatprep.subr.mxu0 0.0
  %957 = vmatpush2.xpose.msra.mxu0 0.0
  %958 = vmatprep.subr.mxu0 0.0
  %959 = vmatpush2.xpose.msra.mxu0 0.0
  %960 = vmatprep.subr.mxu0 0.0
  %961 = vmatpush2.xpose.msra.mxu0 0.0
  %962 = vmatprep.subr.mxu0 0.0
  %963 = vmatpush2.xpose.msra.mxu0 0.0
  %964 = vmatprep.subr.mxu0 0.0
  %965 = vmatpush2.xpose.msra.mxu0 0.0
  %966 = vmatprep.subr.mxu0 0.0
  %967 = vmatpush2.xpose.msra.mxu0 0.0
  %968 = vmatprep.subr.mxu0 0.0
  %969 = vmatpush2.xpose.msra.mxu0 0.0
  %970 = vmatprep.subr.mxu0 0.0
  %971 = vmatpush2.xpose.msra.mxu0 0.0
  %972 = vmatprep.subr.mxu0 0.0
  %973 = vmatpush2.xpose.msra.mxu0 0.0
  %974 = vmatprep.mubr.f32.mxu0 0.0
  %975 = vmatmul.mubr.f32.gmra.mxu0 %v899
  %v976 = vpop.f32.mrf.mxu0
  %v977 = vadd.f32 0.0, %v976
  %v978 = vpop.f32.mrf.mxu0
  %979 = vmatprep.mubr.f32.mxu0 0.0
  %980 = vmatmul.mubr.f32.gmra.mxu0 %v902
  %v981 = vpop.f32.mrf.mxu0
  %v982 = vadd.f32 0.0, %v981
  %v983 = vpop.f32.mrf.mxu0
  %984 = vdwg.mxu0
  %v986 = vsel %vm389, %v224, 0
  %v989 = vsel %vm389, %v229, 0
  %v992 = vsel %vm389, %v887, 0
  %v995 = vsel %vm389, %v889, 0
  %997 = vmatprep.subr.mxu0 0.0
  %998 = vmatpush1.xpose.msra.mxu0 0.0
  %999 = vmatprep.subr.mxu0 0.0
  %1000 = vmatpush1.xpose.msra.mxu0 0.0
  %1001 = vmatprep.subr.mxu0 0.0
  %1002 = vmatpush1.xpose.msra.mxu0 0.0
  %1003 = vmatprep.subr.mxu0 0.0
  %1004 = vmatpush1.xpose.msra.mxu0 0.0
  %1005 = vmatprep.subr.mxu0 0.0
  %1006 = vmatpush1.xpose.msra.mxu0 0.0
  %1007 = vmatprep.subr.mxu0 0.0
  %1008 = vmatpush1.xpose.msra.mxu0 0.0
  %1009 = vmatprep.subr.mxu0 0.0
  %1010 = vmatpush1.xpose.msra.mxu0 0.0
  %1011 = vmatprep.subr.mxu0 0.0
  %1012 = vmatpush1.xpose.msra.mxu0 0.0
  %1013 = vmatprep.subr.mxu0 0.0
  %1014 = vmatpush1.xpose.msra.mxu0 0.0
  %1015 = vmatprep.subr.mxu0 0.0
  %1016 = vmatpush1.xpose.msra.mxu0 0.0
  %1017 = vmatprep.subr.mxu0 0.0
  %1018 = vmatpush1.xpose.msra.mxu0 0.0
  %1019 = vmatprep.subr.mxu0 0.0
  %1020 = vmatpush1.xpose.msra.mxu0 0.0
  %1021 = vmatprep.subr.mxu0 0.0
  %1022 = vmatpush1.xpose.msra.mxu0 0.0
  %1023 = vmatprep.subr.mxu0 0.0
  %1024 = vmatpush1.xpose.msra.mxu0 0.0
  %1025 = vmatprep.subr.mxu0 0.0
  %1026 = vmatpush1.xpose.msra.mxu0 %v995
  %1027 = vmatprep.subr.mxu0 0.0
  %1028 = vmatpush1.xpose.msra.mxu0 %v992
  %1029 = vmatprep.subr.mxu0 0.0
  %1030 = vmatpush2.xpose.msra.mxu0 0.0
  %1031 = vmatprep.subr.mxu0 0.0
  %1032 = vmatpush2.xpose.msra.mxu0 0.0
  %1033 = vmatprep.subr.mxu0 0.0
  %1034 = vmatpush2.xpose.msra.mxu0 0.0
  %1035 = vmatprep.subr.mxu0 0.0
  %1036 = vmatpush2.xpose.msra.mxu0 0.0
  %1037 = vmatprep.subr.mxu0 0.0
  %1038 = vmatpush2.xpose.msra.mxu0 0.0
  %1039 = vmatprep.subr.mxu0 0.0
  %1040 = vmatpush2.xpose.msra.mxu0 0.0
  %1041 = vmatprep.subr.mxu0 0.0
  %1042 = vmatpush2.xpose.msra.mxu0 0.0
  %1043 = vmatprep.subr.mxu0 0.0
  %1044 = vmatpush2.xpose.msra.mxu0 0.0
  %1045 = vmatprep.subr.mxu0 0.0
  %1046 = vmatpush2.xpose.msra.mxu0 0.0
  %1047 = vmatprep.subr.mxu0 0.0
  %1048 = vmatpush2.xpose.msra.mxu0 0.0
  %1049 = vmatprep.subr.mxu0 0.0
  %1050 = vmatpush2.xpose.msra.mxu0 0.0
  %1051 = vmatprep.subr.mxu0 0.0
  %1052 = vmatpush2.xpose.msra.mxu0 0.0
  %1053 = vmatprep.subr.mxu0 0.0
  %1054 = vmatpush2.xpose.msra.mxu0 0.0
  %1055 = vmatprep.subr.mxu0 0.0
  %1056 = vmatpush2.xpose.msra.mxu0 0.0
  %1057 = vmatprep.subr.mxu0 0.0
  %1058 = vmatpush2.xpose.msra.mxu0 0.0
  %1059 = vmatprep.subr.mxu0 0.0
  %1060 = vmatpush2.xpose.msra.mxu0 0.0
  %1061 = vmatprep.mubr.f32.mxu0 0.0
  %1062 = vmatmul.mubr.f32.gmra.mxu0 %v986
  %v1063 = vpop.f32.mrf.mxu0
  %v1064 = vadd.f32 0.0, %v1063
  %v1065 = vpop.f32.mrf.mxu0
  %1066 = vmatprep.mubr.f32.mxu0 0.0
  %1067 = vmatmul.mubr.f32.gmra.mxu0 %v989
  %v1068 = vpop.f32.mrf.mxu0
  %v1069 = vadd.f32 0.0, %v1068
  %v1070 = vpop.f32.mrf.mxu0
  %1071 = vdwg.mxu0
  %v1073 = vsel %vm389, %v33, 0
  %v1076 = vsel %vm389, %v34, 0
  %v1079 = vsel %vm389, %v35, 0
  %v1082 = vsel %vm389, %v36, 0
  %1084 = vmatprep.subr.mxu0 0.0
  %1085 = vmatpush1.msra.mxu0 0.0
  %1086 = vmatprep.subr.mxu0 0.0
  %1087 = vmatpush1.msra.mxu0 0.0
  %1088 = vmatprep.subr.mxu0 0.0
  %1089 = vmatpush1.msra.mxu0 0.0
  %1090 = vmatprep.subr.mxu0 0.0
  %1091 = vmatpush1.msra.mxu0 0.0
  %1092 = vmatprep.subr.mxu0 0.0
  %1093 = vmatpush1.msra.mxu0 0.0
  %1094 = vmatprep.subr.mxu0 0.0
  %1095 = vmatpush1.msra.mxu0 0.0
  %1096 = vmatprep.subr.mxu0 0.0
  %1097 = vmatpush1.msra.mxu0 0.0
  %1098 = vmatprep.subr.mxu0 0.0
  %1099 = vmatpush1.msra.mxu0 0.0
  %1100 = vmatprep.subr.mxu0 0.0
  %1101 = vmatpush1.msra.mxu0 0.0
  %1102 = vmatprep.subr.mxu0 0.0
  %1103 = vmatpush1.msra.mxu0 0.0
  %1104 = vmatprep.subr.mxu0 0.0
  %1105 = vmatpush1.msra.mxu0 0.0
  %1106 = vmatprep.subr.mxu0 0.0
  %1107 = vmatpush1.msra.mxu0 0.0
  %1108 = vmatprep.subr.mxu0 0.0
  %1109 = vmatpush1.msra.mxu0 0.0
  %1110 = vmatprep.subr.mxu0 0.0
  %1111 = vmatpush1.msra.mxu0 0.0
  %1112 = vmatprep.subr.mxu0 0.0
  %1113 = vmatpush1.msra.mxu0 %v1069
  %1114 = vmatprep.subr.mxu0 0.0
  %1115 = vmatpush1.msra.mxu0 %v1064
  %1116 = vmatprep.subr.mxu0 0.0
  %1117 = vmatpush2.msra.mxu0 0.0
  %1118 = vmatprep.subr.mxu0 0.0
  %1119 = vmatpush2.msra.mxu0 0.0
  %1120 = vmatprep.subr.mxu0 0.0
  %1121 = vmatpush2.msra.mxu0 0.0
  %1122 = vmatprep.subr.mxu0 0.0
  %1123 = vmatpush2.msra.mxu0 0.0
  %1124 = vmatprep.subr.mxu0 0.0
  %1125 = vmatpush2.msra.mxu0 0.0
  %1126 = vmatprep.subr.mxu0 0.0
  %1127 = vmatpush2.msra.mxu0 0.0
  %1128 = vmatprep.subr.mxu0 0.0
  %1129 = vmatpush2.msra.mxu0 0.0
  %1130 = vmatprep.subr.mxu0 0.0
  %1131 = vmatpush2.msra.mxu0 0.0
  %1132 = vmatprep.subr.mxu0 0.0
  %1133 = vmatpush2.msra.mxu0 0.0
  %1134 = vmatprep.subr.mxu0 0.0
  %1135 = vmatpush2.msra.mxu0 0.0
  %1136 = vmatprep.subr.mxu0 0.0
  %1137 = vmatpush2.msra.mxu0 0.0
  %1138 = vmatprep.subr.mxu0 0.0
  %1139 = vmatpush2.msra.mxu0 0.0
  %1140 = vmatprep.subr.mxu0 0.0
  %1141 = vmatpush2.msra.mxu0 0.0
  %1142 = vmatprep.subr.mxu0 0.0
  %1143 = vmatpush2.msra.mxu0 0.0
  %1144 = vmatprep.subr.mxu0 0.0
  %1145 = vmatpush2.msra.mxu0 0.0
  %1146 = vmatprep.subr.mxu0 0.0
  %1147 = vmatpush2.msra.mxu0 0.0
  %1148 = vmatprep.mubr.f32.mxu0 0.0
  %1149 = vmatmul.mubr.f32.gmra.mxu0 %v1073
  %v1150 = vpop.f32.mrf.mxu0
  %v1151 = vadd.f32 0.0, %v1150
  %v1152 = vpop.f32.mrf.mxu0
  %1153 = vmatprep.mubr.f32.mxu0 0.0
  %1154 = vmatmul.mubr.f32.gmra.mxu0 %v1076
  %v1155 = vpop.f32.mrf.mxu0
  %v1156 = vadd.f32 0.0, %v1155
  %v1157 = vpop.f32.mrf.mxu0
  %1158 = vmatprep.mubr.f32.mxu0 0.0
  %1159 = vmatmul.mubr.f32.gmra.mxu0 %v1079
  %v1160 = vpop.f32.mrf.mxu0
  %v1161 = vadd.f32 0.0, %v1160
  %v1162 = vpop.f32.mrf.mxu0
  %1163 = vmatprep.mubr.f32.mxu0 0.0
  %1164 = vmatmul.mubr.f32.gmra.mxu0 %v1082
  %v1165 = vpop.f32.mrf.mxu0
  %v1166 = vadd.f32 0.0, %v1165
  %v1167 = vpop.f32.mrf.mxu0
  %1168 = vdwg.mxu0
  %v1170 = vsel %vm389, %v29, 0
  %v1173 = vsel %vm389, %v30, 0
  %v1176 = vsel %vm389, %v31, 0
  %v1179 = vsel %vm389, %v32, 0
  %1181 = vmatprep.subr.mxu0 0.0
  %1182 = vmatpush1.msra.mxu0 0.0
  %1183 = vmatprep.subr.mxu0 0.0
  %1184 = vmatpush1.msra.mxu0 0.0
  %1185 = vmatprep.subr.mxu0 0.0
  %1186 = vmatpush1.msra.mxu0 0.0
  %1187 = vmatprep.subr.mxu0 0.0
  %1188 = vmatpush1.msra.mxu0 0.0
  %1189 = vmatprep.subr.mxu0 0.0
  %1190 = vmatpush1.msra.mxu0 0.0
  %1191 = vmatprep.subr.mxu0 0.0
  %1192 = vmatpush1.msra.mxu0 0.0
  %1193 = vmatprep.subr.mxu0 0.0
  %1194 = vmatpush1.msra.mxu0 0.0
  %1195 = vmatprep.subr.mxu0 0.0
  %1196 = vmatpush1.msra.mxu0 0.0
  %1197 = vmatprep.subr.mxu0 0.0
  %1198 = vmatpush1.msra.mxu0 0.0
  %1199 = vmatprep.subr.mxu0 0.0
  %1200 = vmatpush1.msra.mxu0 0.0
  %1201 = vmatprep.subr.mxu0 0.0
  %1202 = vmatpush1.msra.mxu0 0.0
  %1203 = vmatprep.subr.mxu0 0.0
  %1204 = vmatpush1.msra.mxu0 0.0
  %1205 = vmatprep.subr.mxu0 0.0
  %1206 = vmatpush1.msra.mxu0 0.0
  %1207 = vmatprep.subr.mxu0 0.0
  %1208 = vmatpush1.msra.mxu0 0.0
  %1209 = vmatprep.subr.mxu0 0.0
  %1210 = vmatpush1.msra.mxu0 %v982
  %1211 = vmatprep.subr.mxu0 0.0
  %1212 = vmatpush1.msra.mxu0 %v977
  %1213 = vmatprep.subr.mxu0 0.0
  %1214 = vmatpush2.msra.mxu0 0.0
  %1215 = vmatprep.subr.mxu0 0.0
  %1216 = vmatpush2.msra.mxu0 0.0
  %1217 = vmatprep.subr.mxu0 0.0
  %1218 = vmatpush2.msra.mxu0 0.0
  %1219 = vmatprep.subr.mxu0 0.0
  %1220 = vmatpush2.msra.mxu0 0.0
  %1221 = vmatprep.subr.mxu0 0.0
  %1222 = vmatpush2.msra.mxu0 0.0
  %1223 = vmatprep.subr.mxu0 0.0
  %1224 = vmatpush2.msra.mxu0 0.0
  %1225 = vmatprep.subr.mxu0 0.0
  %1226 = vmatpush2.msra.mxu0 0.0
  %1227 = vmatprep.subr.mxu0 0.0
  %1228 = vmatpush2.msra.mxu0 0.0
  %1229 = vmatprep.subr.mxu0 0.0
  %1230 = vmatpush2.msra.mxu0 0.0
  %1231 = vmatprep.subr.mxu0 0.0
  %1232 = vmatpush2.msra.mxu0 0.0
  %1233 = vmatprep.subr.mxu0 0.0
  %1234 = vmatpush2.msra.mxu0 0.0
  %1235 = vmatprep.subr.mxu0 0.0
  %1236 = vmatpush2.msra.mxu0 0.0
  %1237 = vmatprep.subr.mxu0 0.0
  %1238 = vmatpush2.msra.mxu0 0.0
  %1239 = vmatprep.subr.mxu0 0.0
  %1240 = vmatpush2.msra.mxu0 0.0
  %1241 = vmatprep.subr.mxu0 0.0
  %1242 = vmatpush2.msra.mxu0 0.0
  %1243 = vmatprep.subr.mxu0 0.0
  %1244 = vmatpush2.msra.mxu0 0.0
  %1245 = vmatprep.mubr.f32.mxu0 0.0
  %1246 = vmatmul.mubr.f32.gmra.mxu0 %v1170
  %v1247 = vpop.f32.mrf.mxu0
  %v1248 = vadd.f32 %v1151, %v1247
  %v1249 = vpop.f32.mrf.mxu0
  %1250 = vmatprep.mubr.f32.mxu0 0.0
  %1251 = vmatmul.mubr.f32.gmra.mxu0 %v1173
  %v1252 = vpop.f32.mrf.mxu0
  %v1253 = vadd.f32 %v1156, %v1252
  %v1254 = vpop.f32.mrf.mxu0
  %1255 = vmatprep.mubr.f32.mxu0 0.0
  %1256 = vmatmul.mubr.f32.gmra.mxu0 %v1176
  %v1257 = vpop.f32.mrf.mxu0
  %v1258 = vadd.f32 %v1161, %v1257
  %v1259 = vpop.f32.mrf.mxu0
  %1260 = vmatprep.mubr.f32.mxu0 0.0
  %1261 = vmatmul.mubr.f32.gmra.mxu0 %v1179
  %v1262 = vpop.f32.mrf.mxu0
  %v1263 = vadd.f32 %v1166, %v1262
  %v1264 = vpop.f32.mrf.mxu0
  %1265 = vdwg.mxu0
  %v1266 = vadd.f32 %v1248, %v49
  %v1267 = vadd.f32 %v1253, %v50
  %v1268 = vadd.f32 %v1258, %v51
  %v1269 = vadd.f32 %v1263, %v52
  %v1270 = vadd.f32 %v1266, %v61
  %v1271 = vadd.f32 %v1267, %v62
  %v1272 = vadd.f32 %v1268, %v63
  %v1273 = vadd.f32 %v1269, %v64
  %v1274 = vsel %vm389, %v1270, 0.0
  %v1275 = vsel %vm389, %v1271, 0.0
  %v1276 = vadd.f32 %v1274, %v1275
  %v1277 = vsel %vm389, %v1272, 0.0
  %v1278 = vadd.f32 %v1276, %v1277
  %v1279 = vsel %vm389, %v1273, 0.0
  %v1280 = vadd.f32 %v1278, %v1279
  %v1281 = vrot.slane %v1280, 4
  %v1282 = vadd.f32 %v1280, %v1281
  %v1283 = vrot.slane %v1282, 2
  %v1284 = vadd.f32 %v1282, %v1283
  %v1285 = vrot.slane %v1284, 1
  %v1286 = vadd.f32 %v1284, %v1285
  %v1287 = vrcp.pop 32.0
  %v1288 = vmul.f32 %v1286, %v1287
  %v1289 = vsub.f32 %v1270, %v1288
  %v1290 = vsub.f32 %v1271, %v1288
  %v1291 = vsub.f32 %v1272, %v1288
  %v1292 = vsub.f32 %v1273, %v1288
  %v1293 = vmul.f32 %v1289, %v1289
  %v1294 = vmul.f32 %v1290, %v1290
  %v1295 = vmul.f32 %v1291, %v1291
  %v1296 = vmul.f32 %v1292, %v1292
  %v1297 = vsel %vm389, %v1293, 0.0
  %v1298 = vsel %vm389, %v1294, 0.0
  %v1299 = vadd.f32 %v1297, %v1298
  %v1300 = vsel %vm389, %v1295, 0.0
  %v1301 = vadd.f32 %v1299, %v1300
  %v1302 = vsel %vm389, %v1296, 0.0
  %v1303 = vadd.f32 %v1301, %v1302
  %v1304 = vrot.slane %v1303, 4
  %v1305 = vadd.f32 %v1303, %v1304
  %v1306 = vrot.slane %v1305, 2
  %v1307 = vadd.f32 %v1305, %v1306
  %v1308 = vrot.slane %v1307, 1
  %v1309 = vadd.f32 %v1307, %v1308
  %v1310 = vmul.f32 %v1309, %v1287
  %v1311 = vadd.f32 %v1310, 1e-05
  %v1312 = vrsqrt.pop %v1311
  %v1313 = vmul.f32 %v1289, %v1312
  %v1314 = vmul.f32 %v1290, %v1312
  %v1315 = vmul.f32 %v1291, %v1312
  %v1316 = vmul.f32 %v1292, %v1312
  %v1317 = vmul.f32 %v1313, %v53
  %v1318 = vmul.f32 %v1314, %v54
  %v1319 = vmul.f32 %v1315, %v55
  %v1320 = vmul.f32 %v1316, %v56
  %v1321 = vadd.f32 %v1317, %v57
  %v1322 = vadd.f32 %v1318, %v58
  %v1323 = vadd.f32 %v1319, %v59
  %v1324 = vadd.f32 %v1320, %v60
  %1325 = vst.msk [vmem:[%s4] sm:$0xff] %vm389, %v1321
  %1326 = vst.msk [vmem:[%s4 + $0x8] sm:$0xff] %vm389, %v1322
  %1327 = vst.msk [vmem:[%s4 + $0x10] sm:$0xff] %vm389, %v1323
  %1328 = vst.msk [vmem:[%s4 + $0x18] sm:$0xff] %vm389, %v1324
  %v1330 = vsel %vm389, %v339, 0
  %v1333 = vsel %vm389, %v344, 0
  %v1336 = vsel %vm389, %v891, 0
  %v1339 = vsel %vm389, %v893, 0
  %1341 = vmatprep.subr.mxu0 0.0
  %1342 = vmatpush1.xpose.msra.mxu0 0.0
  %1343 = vmatprep.subr.mxu0 0.0
  %1344 = vmatpush1.xpose.msra.mxu0 0.0
  %1345 = vmatprep.subr.mxu0 0.0
  %1346 = vmatpush1.xpose.msra.mxu0 0.0
  %1347 = vmatprep.subr.mxu0 0.0
  %1348 = vmatpush1.xpose.msra.mxu0 0.0
  %1349 = vmatprep.subr.mxu0 0.0
  %1350 = vmatpush1.xpose.msra.mxu0 0.0
  %1351 = vmatprep.subr.mxu0 0.0
  %1352 = vmatpush1.xpose.msra.mxu0 0.0
  %1353 = vmatprep.subr.mxu0 0.0
  %1354 = vmatpush1.xpose.msra.mxu0 0.0
  %1355 = vmatprep.subr.mxu0 0.0
  %1356 = vmatpush1.xpose.msra.mxu0 0.0
  %1357 = vmatprep.subr.mxu0 0.0
  %1358 = vmatpush1.xpose.msra.mxu0 0.0
  %1359 = vmatprep.subr.mxu0 0.0
  %1360 = vmatpush1.xpose.msra.mxu0 0.0
  %1361 = vmatprep.subr.mxu0 0.0
  %1362 = vmatpush1.xpose.msra.mxu0 0.0
  %1363 = vmatprep.subr.mxu0 0.0
  %1364 = vmatpush1.xpose.msra.mxu0 0.0
  %1365 = vmatprep.subr.mxu0 0.0
  %1366 = vmatpush1.xpose.msra.mxu0 0.0
  %1367 = vmatprep.subr.mxu0 0.0
  %1368 = vmatpush1.xpose.msra.mxu0 0.0
  %1369 = vmatprep.subr.mxu0 0.0
  %1370 = vmatpush1.xpose.msra.mxu0 %v1339
  %1371 = vmatprep.subr.mxu0 0.0
  %1372 = vmatpush1.xpose.msra.mxu0 %v1336
  %1373 = vmatprep.subr.mxu0 0.0
  %1374 = vmatpush2.xpose.msra.mxu0 0.0
  %1375 = vmatprep.subr.mxu0 0.0
  %1376 = vmatpush2.xpose.msra.mxu0 0.0
  %1377 = vmatprep.subr.mxu0 0.0
  %1378 = vmatpush2.xpose.msra.mxu0 0.0
  %1379 = vmatprep.subr.mxu0 0.0
  %1380 = vmatpush2.xpose.msra.mxu0 0.0
  %1381 = vmatprep.subr.mxu0 0.0
  %1382 = vmatpush2.xpose.msra.mxu0 0.0
  %1383 = vmatprep.subr.mxu0 0.0
  %1384 = vmatpush2.xpose.msra.mxu0 0.0
  %1385 = vmatprep.subr.mxu0 0.0
  %1386 = vmatpush2.xpose.msra.mxu0 0.0
  %1387 = vmatprep.subr.mxu0 0.0
  %1388 = vmatpush2.xpose.msra.mxu0 0.0
  %1389 = vmatprep.subr.mxu0 0.0
  %1390 = vmatpush2.xpose.msra.mxu0 0.0
  %1391 = vmatprep.subr.mxu0 0.0
  %1392 = vmatpush2.xpose.msra.mxu0 0.0
  %1393 = vmatprep.subr.mxu0 0.0
  %1394 = vmatpush2.xpose.msra.mxu0 0.0
  %1395 = vmatprep.subr.mxu0 0.0
  %1396 = vmatpush2.xpose.msra.mxu0 0.0
  %1397 = vmatprep.subr.mxu0 0.0
  %1398 = vmatpush2.xpose.msra.mxu0 0.0
  %1399 = vmatprep.subr.mxu0 0.0
  %1400 = vmatpush2.xpose.msra.mxu0 0.0
  %1401 = vmatprep.subr.mxu0 0.0
  %1402 = vmatpush2.xpose.msra.mxu0 0.0
  %1403 = vmatprep.subr.mxu0 0.0
  %1404 = vmatpush2.xpose.msra.mxu0 0.0
  %1405 = vmatprep.mubr.f32.mxu0 0.0
  %1406 = vmatmul.mubr.f32.gmra.mxu0 %v1330
  %v1407 = vpop.f32.mrf.mxu0
  %v1408 = vadd.f32 0.0, %v1407
  %v1409 = vpop.f32.mrf.mxu0
  %1410 = vmatprep.mubr.f32.mxu0 0.0
  %1411 = vmatmul.mubr.f32.gmra.mxu0 %v1333
  %v1412 = vpop.f32.mrf.mxu0
  %v1413 = vadd.f32 0.0, %v1412
  %v1414 = vpop.f32.mrf.mxu0
  %1415 = vdwg.mxu0
  %v1417 = vsel %vm389, %v349, 0
  %v1420 = vsel %vm389, %v354, 0
  %v1423 = vsel %vm389, %v895, 0
  %v1426 = vsel %vm389, %v897, 0
  %1428 = vmatprep.subr.mxu0 0.0
  %1429 = vmatpush1.xpose.msra.mxu0 0.0
  %1430 = vmatprep.subr.mxu0 0.0
  %1431 = vmatpush1.xpose.msra.mxu0 0.0
  %1432 = vmatprep.subr.mxu0 0.0
  %1433 = vmatpush1.xpose.msra.mxu0 0.0
  %1434 = vmatprep.subr.mxu0 0.0
  %1435 = vmatpush1.xpose.msra.mxu0 0.0
  %1436 = vmatprep.subr.mxu0 0.0
  %1437 = vmatpush1.xpose.msra.mxu0 0.0
  %1438 = vmatprep.subr.mxu0 0.0
  %1439 = vmatpush1.xpose.msra.mxu0 0.0
  %1440 = vmatprep.subr.mxu0 0.0
  %1441 = vmatpush1.xpose.msra.mxu0 0.0
  %1442 = vmatprep.subr.mxu0 0.0
  %1443 = vmatpush1.xpose.msra.mxu0 0.0
  %1444 = vmatprep.subr.mxu0 0.0
  %1445 = vmatpush1.xpose.msra.mxu0 0.0
  %1446 = vmatprep.subr.mxu0 0.0
  %1447 = vmatpush1.xpose.msra.mxu0 0.0
  %1448 = vmatprep.subr.mxu0 0.0
  %1449 = vmatpush1.xpose.msra.mxu0 0.0
  %1450 = vmatprep.subr.mxu0 0.0
  %1451 = vmatpush1.xpose.msra.mxu0 0.0
  %1452 = vmatprep.subr.mxu0 0.0
  %1453 = vmatpush1.xpose.msra.mxu0 0.0
  %1454 = vmatprep.subr.mxu0 0.0
  %1455 = vmatpush1.xpose.msra.mxu0 0.0
  %1456 = vmatprep.subr.mxu0 0.0
  %1457 = vmatpush1.xpose.msra.mxu0 %v1426
  %1458 = vmatprep.subr.mxu0 0.0
  %1459 = vmatpush1.xpose.msra.mxu0 %v1423
  %1460 = vmatprep.subr.mxu0 0.0
  %1461 = vmatpush2.xpose.msra.mxu0 0.0
  %1462 = vmatprep.subr.mxu0 0.0
  %1463 = vmatpush2.xpose.msra.mxu0 0.0
  %1464 = vmatprep.subr.mxu0 0.0
  %1465 = vmatpush2.xpose.msra.mxu0 0.0
  %1466 = vmatprep.subr.mxu0 0.0
  %1467 = vmatpush2.xpose.msra.mxu0 0.0
  %1468 = vmatprep.subr.mxu0 0.0
  %1469 = vmatpush2.xpose.msra.mxu0 0.0
  %1470 = vmatprep.subr.mxu0 0.0
  %1471 = vmatpush2.xpose.msra.mxu0 0.0
  %1472 = vmatprep.subr.mxu0 0.0
  %1473 = vmatpush2.xpose.msra.mxu0 0.0
  %1474 = vmatprep.subr.mxu0 0.0
  %1475 = vmatpush2.xpose.msra.mxu0 0.0
  %1476 = vmatprep.subr.mxu0 0.0
  %1477 = vmatpush2.xpose.msra.mxu0 0.0
  %1478 = vmatprep.subr.mxu0 0.0
  %1479 = vmatpush2.xpose.msra.mxu0 0.0
  %1480 = vmatprep.subr.mxu0 0.0
  %1481 = vmatpush2.xpose.msra.mxu0 0.0
  %1482 = vmatprep.subr.mxu0 0.0
  %1483 = vmatpush2.xpose.msra.mxu0 0.0
  %1484 = vmatprep.subr.mxu0 0.0
  %1485 = vmatpush2.xpose.msra.mxu0 0.0
  %1486 = vmatprep.subr.mxu0 0.0
  %1487 = vmatpush2.xpose.msra.mxu0 0.0
  %1488 = vmatprep.subr.mxu0 0.0
  %1489 = vmatpush2.xpose.msra.mxu0 0.0
  %1490 = vmatprep.subr.mxu0 0.0
  %1491 = vmatpush2.xpose.msra.mxu0 0.0
  %1492 = vmatprep.mubr.f32.mxu0 0.0
  %1493 = vmatmul.mubr.f32.gmra.mxu0 %v1417
  %v1494 = vpop.f32.mrf.mxu0
  %v1495 = vadd.f32 0.0, %v1494
  %v1496 = vpop.f32.mrf.mxu0
  %1497 = vmatprep.mubr.f32.mxu0 0.0
  %1498 = vmatmul.mubr.f32.gmra.mxu0 %v1420
  %v1499 = vpop.f32.mrf.mxu0
  %v1500 = vadd.f32 0.0, %v1499
  %v1501 = vpop.f32.mrf.mxu0
  %1502 = vdwg.mxu0
  %1503 = vmatprep.subr.mxu0 0.0
  %1504 = vmatpush1.msra.mxu0 0.0
  %1505 = vmatprep.subr.mxu0 0.0
  %1506 = vmatpush1.msra.mxu0 0.0
  %1507 = vmatprep.subr.mxu0 0.0
  %1508 = vmatpush1.msra.mxu0 0.0
  %1509 = vmatprep.subr.mxu0 0.0
  %1510 = vmatpush1.msra.mxu0 0.0
  %1511 = vmatprep.subr.mxu0 0.0
  %1512 = vmatpush1.msra.mxu0 0.0
  %1513 = vmatprep.subr.mxu0 0.0
  %1514 = vmatpush1.msra.mxu0 0.0
  %1515 = vmatprep.subr.mxu0 0.0
  %1516 = vmatpush1.msra.mxu0 0.0
  %1517 = vmatprep.subr.mxu0 0.0
  %1518 = vmatpush1.msra.mxu0 0.0
  %1519 = vmatprep.subr.mxu0 0.0
  %1520 = vmatpush1.msra.mxu0 0.0
  %1521 = vmatprep.subr.mxu0 0.0
  %1522 = vmatpush1.msra.mxu0 0.0
  %1523 = vmatprep.subr.mxu0 0.0
  %1524 = vmatpush1.msra.mxu0 0.0
  %1525 = vmatprep.subr.mxu0 0.0
  %1526 = vmatpush1.msra.mxu0 0.0
  %1527 = vmatprep.subr.mxu0 0.0
  %1528 = vmatpush1.msra.mxu0 0.0
  %1529 = vmatprep.subr.mxu0 0.0
  %1530 = vmatpush1.msra.mxu0 0.0
  %1531 = vmatprep.subr.mxu0 0.0
  %1532 = vmatpush1.msra.mxu0 %v1500
  %1533 = vmatprep.subr.mxu0 0.0
  %1534 = vmatpush1.msra.mxu0 %v1495
  %1535 = vmatprep.subr.mxu0 0.0
  %1536 = vmatpush2.msra.mxu0 0.0
  %1537 = vmatprep.subr.mxu0 0.0
  %1538 = vmatpush2.msra.mxu0 0.0
  %1539 = vmatprep.subr.mxu0 0.0
  %1540 = vmatpush2.msra.mxu0 0.0
  %1541 = vmatprep.subr.mxu0 0.0
  %1542 = vmatpush2.msra.mxu0 0.0
  %1543 = vmatprep.subr.mxu0 0.0
  %1544 = vmatpush2.msra.mxu0 0.0
  %1545 = vmatprep.subr.mxu0 0.0
  %1546 = vmatpush2.msra.mxu0 0.0
  %1547 = vmatprep.subr.mxu0 0.0
  %1548 = vmatpush2.msra.mxu0 0.0
  %1549 = vmatprep.subr.mxu0 0.0
  %1550 = vmatpush2.msra.mxu0 0.0
  %1551 = vmatprep.subr.mxu0 0.0
  %1552 = vmatpush2.msra.mxu0 0.0
  %1553 = vmatprep.subr.mxu0 0.0
  %1554 = vmatpush2.msra.mxu0 0.0
  %1555 = vmatprep.subr.mxu0 0.0
  %1556 = vmatpush2.msra.mxu0 0.0
  %1557 = vmatprep.subr.mxu0 0.0
  %1558 = vmatpush2.msra.mxu0 0.0
  %1559 = vmatprep.subr.mxu0 0.0
  %1560 = vmatpush2.msra.mxu0 0.0
  %1561 = vmatprep.subr.mxu0 0.0
  %1562 = vmatpush2.msra.mxu0 0.0
  %1563 = vmatprep.subr.mxu0 0.0
  %1564 = vmatpush2.msra.mxu0 0.0
  %1565 = vmatprep.subr.mxu0 0.0
  %1566 = vmatpush2.msra.mxu0 0.0
  %1567 = vmatprep.mubr.f32.mxu0 0.0
  %1568 = vmatmul.mubr.f32.gmra.mxu0 %v1073
  %v1569 = vpop.f32.mrf.mxu0
  %v1570 = vadd.f32 0.0, %v1569
  %v1571 = vpop.f32.mrf.mxu0
  %1572 = vmatprep.mubr.f32.mxu0 0.0
  %1573 = vmatmul.mubr.f32.gmra.mxu0 %v1076
  %v1574 = vpop.f32.mrf.mxu0
  %v1575 = vadd.f32 0.0, %v1574
  %v1576 = vpop.f32.mrf.mxu0
  %1577 = vmatprep.mubr.f32.mxu0 0.0
  %1578 = vmatmul.mubr.f32.gmra.mxu0 %v1079
  %v1579 = vpop.f32.mrf.mxu0
  %v1580 = vadd.f32 0.0, %v1579
  %v1581 = vpop.f32.mrf.mxu0
  %1582 = vmatprep.mubr.f32.mxu0 0.0
  %1583 = vmatmul.mubr.f32.gmra.mxu0 %v1082
  %v1584 = vpop.f32.mrf.mxu0
  %v1585 = vadd.f32 0.0, %v1584
  %v1586 = vpop.f32.mrf.mxu0
  %1587 = vdwg.mxu0
  %1588 = vmatprep.subr.mxu0 0.0
  %1589 = vmatpush1.msra.mxu0 0.0
  %1590 = vmatprep.subr.mxu0 0.0
  %1591 = vmatpush1.msra.mxu0 0.0
  %1592 = vmatprep.subr.mxu0 0.0
  %1593 = vmatpush1.msra.mxu0 0.0
  %1594 = vmatprep.subr.mxu0 0.0
  %1595 = vmatpush1.msra.mxu0 0.0
  %1596 = vmatprep.subr.mxu0 0.0
  %1597 = vmatpush1.msra.mxu0 0.0
  %1598 = vmatprep.subr.mxu0 0.0
  %1599 = vmatpush1.msra.mxu0 0.0
  %1600 = vmatprep.subr.mxu0 0.0
  %1601 = vmatpush1.msra.mxu0 0.0
  %1602 = vmatprep.subr.mxu0 0.0
  %1603 = vmatpush1.msra.mxu0 0.0
  %1604 = vmatprep.subr.mxu0 0.0
  %1605 = vmatpush1.msra.mxu0 0.0
  %1606 = vmatprep.subr.mxu0 0.0
  %1607 = vmatpush1.msra.mxu0 0.0
  %1608 = vmatprep.subr.mxu0 0.0
  %1609 = vmatpush1.msra.mxu0 0.0
  %1610 = vmatprep.subr.mxu0 0.0
  %1611 = vmatpush1.msra.mxu0 0.0
  %1612 = vmatprep.subr.mxu0 0.0
  %1613 = vmatpush1.msra.mxu0 0.0
  %1614 = vmatprep.subr.mxu0 0.0
  %1615 = vmatpush1.msra.mxu0 0.0
  %1616 = vmatprep.subr.mxu0 0.0
  %1617 = vmatpush1.msra.mxu0 %v1413
  %1618 = vmatprep.subr.mxu0 0.0
  %1619 = vmatpush1.msra.mxu0 %v1408
  %1620 = vmatprep.subr.mxu0 0.0
  %1621 = vmatpush2.msra.mxu0 0.0
  %1622 = vmatprep.subr.mxu0 0.0
  %1623 = vmatpush2.msra.mxu0 0.0
  %1624 = vmatprep.subr.mxu0 0.0
  %1625 = vmatpush2.msra.mxu0 0.0
  %1626 = vmatprep.subr.mxu0 0.0
  %1627 = vmatpush2.msra.mxu0 0.0
  %1628 = vmatprep.subr.mxu0 0.0
  %1629 = vmatpush2.msra.mxu0 0.0
  %1630 = vmatprep.subr.mxu0 0.0
  %1631 = vmatpush2.msra.mxu0 0.0
  %1632 = vmatprep.subr.mxu0 0.0
  %1633 = vmatpush2.msra.mxu0 0.0
  %1634 = vmatprep.subr.mxu0 0.0
  %1635 = vmatpush2.msra.mxu0 0.0
  %1636 = vmatprep.subr.mxu0 0.0
  %1637 = vmatpush2.msra.mxu0 0.0
  %1638 = vmatprep.subr.mxu0 0.0
  %1639 = vmatpush2.msra.mxu0 0.0
  %1640 = vmatprep.subr.mxu0 0.0
  %1641 = vmatpush2.msra.mxu0 0.0
  %1642 = vmatprep.subr.mxu0 0.0
  %1643 = vmatpush2.msra.mxu0 0.0
  %1644 = vmatprep.subr.mxu0 0.0
  %1645 = vmatpush2.msra.mxu0 0.0
  %1646 = vmatprep.subr.mxu0 0.0
  %1647 = vmatpush2.msra.mxu0 0.0
  %1648 = vmatprep.subr.mxu0 0.0
  %1649 = vmatpush2.msra.mxu0 0.0
  %1650 = vmatprep.subr.mxu0 0.0
  %1651 = vmatpush2.msra.mxu0 0.0
  %1652 = vmatprep.mubr.f32.mxu0 0.0
  %1653 = vmatmul.mubr.f32.gmra.mxu0 %v1170
  %v1654 = vpop.f32.mrf.mxu0
  %v1655 = vadd.f32 %v1570, %v1654
  %v1656 = vpop.f32.mrf.mxu0
  %1657 = vmatprep.mubr.f32.mxu0 0.0
  %1658 = vmatmul.mubr.f32.gmra.mxu0 %v1173
  %v1659 = vpop.f32.mrf.mxu0
  %v1660 = vadd.f32 %v1575, %v1659
  %v1661 = vpop.f32.mrf.mxu0
  %1662 = vmatprep.mubr.f32.mxu0 0.0
  %1663 = vmatmul.mubr.f32.gmra.mxu0 %v1176
  %v1664 = vpop.f32.mrf.mxu0
  %v1665 = vadd.f32 %v1580, %v1664
  %v1666 = vpop.f32.mrf.mxu0
  %1667 = vmatprep.mubr.f32.mxu0 0.0
  %1668 = vmatmul.mubr.f32.gmra.mxu0 %v1179
  %v1669 = vpop.f32.mrf.mxu0
  %v1670 = vadd.f32 %v1585, %v1669
  %v1671 = vpop.f32.mrf.mxu0
  %1672 = vdwg.mxu0
  %v1673 = vadd.f32 %v1655, %v49
  %v1674 = vadd.f32 %v1660, %v50
  %v1675 = vadd.f32 %v1665, %v51
  %v1676 = vadd.f32 %v1670, %v52
  %v1677 = vadd.f32 %v1673, %v66
  %v1678 = vadd.f32 %v1674, %v67
  %v1679 = vadd.f32 %v1675, %v68
  %v1680 = vadd.f32 %v1676, %v69
  %v1681 = vsel %vm389, %v1677, 0.0
  %v1682 = vsel %vm389, %v1678, 0.0
  %v1683 = vadd.f32 %v1681, %v1682
  %v1684 = vsel %vm389, %v1679, 0.0
  %v1685 = vadd.f32 %v1683, %v1684
  %v1686 = vsel %vm389, %v1680, 0.0
  %v1687 = vadd.f32 %v1685, %v1686
  %v1688 = vrot.slane %v1687, 4
  %v1689 = vadd.f32 %v1687, %v1688
  %v1690 = vrot.slane %v1689, 2
  %v1691 = vadd.f32 %v1689, %v1690
  %v1692 = vrot.slane %v1691, 1
  %v1693 = vadd.f32 %v1691, %v1692
  %v1694 = vmul.f32 %v1693, %v1287
  %v1695 = vsub.f32 %v1677, %v1694
  %v1696 = vsub.f32 %v1678, %v1694
  %v1697 = vsub.f32 %v1679, %v1694
  %v1698 = vsub.f32 %v1680, %v1694
  %v1699 = vmul.f32 %v1695, %v1695
  %v1700 = vmul.f32 %v1696, %v1696
  %v1701 = vmul.f32 %v1697, %v1697
  %v1702 = vmul.f32 %v1698, %v1698
  %v1703 = vsel %vm389, %v1699, 0.0
  %v1704 = vsel %vm389, %v1700, 0.0
  %v1705 = vadd.f32 %v1703, %v1704
  %v1706 = vsel %vm389, %v1701, 0.0
  %v1707 = vadd.f32 %v1705, %v1706
  %v1708 = vsel %vm389, %v1702, 0.0
  %v1709 = vadd.f32 %v1707, %v1708
  %v1710 = vrot.slane %v1709, 4
  %v1711 = vadd.f32 %v1709, %v1710
  %v1712 = vrot.slane %v1711, 2
  %v1713 = vadd.f32 %v1711, %v1712
  %v1714 = vrot.slane %v1713, 1
  %v1715 = vadd.f32 %v1713, %v1714
  %v1716 = vmul.f32 %v1715, %v1287
  %v1717 = vadd.f32 %v1716, 1e-05
  %v1718 = vrsqrt.pop %v1717
  %v1719 = vmul.f32 %v1695, %v1718
  %v1720 = vmul.f32 %v1696, %v1718
  %v1721 = vmul.f32 %v1697, %v1718
  %v1722 = vmul.f32 %v1698, %v1718
  %v1723 = vmul.f32 %v1719, %v53
  %v1724 = vmul.f32 %v1720, %v54
  %v1725 = vmul.f32 %v1721, %v55
  %v1726 = vmul.f32 %v1722, %v56
  %v1727 = vadd.f32 %v1723, %v57
  %v1728 = vadd.f32 %v1724, %v58
  %v1729 = vadd.f32 %v1725, %v59
  %v1730 = vadd.f32 %v1726, %v60
  %s1731 = scalar_lea.vmem %s4, 32
  %1732 = vst.msk [vmem:[%s1731] sm:$0xff] %vm389, %v1727
  %1733 = vst.msk [vmem:[%s1731 + $0x8] sm:$0xff] %vm389, %v1728
  %1734 = vst.msk [vmem:[%s1731 + $0x10] sm:$0xff] %vm389, %v1729
  %1735 = vst.msk [vmem:[%s1731 + $0x18] sm:$0xff] %vm389, %v1730
  // Predicated region
  $region18: #{channel_self_attention.1} parent=0 // pred_check
    _
  $region19: #{channel_self_attention.1} parent=0 // pred_check_branch
    %1737 = sbr.rel (0) target = $region21
  $region20: #{channel_self_attention.1} parent=0 // pred_region
    _
  $region21: #{channel_self_attention.1} parent=0 // pred_fallthru
    _
  // Predicated region
  $region22: #{channel_self_attention.1} parent=0 // pred_check
    _
  $region23: #{channel_self_attention.1} parent=0 // pred_check_branch
    %1739 = sbr.rel (0) target = $region25
  $region24: #{channel_self_attention.1} parent=0 // pred_region
    _
  $region25: #{channel_self_attention.1} parent=0 // pred_fallthru
    _

</llo_original>
